<compile_context>
chip_gen: v5e
topology: v5e:2x2
jax: 0.10.0
libtpu: 0.0.40
codegen_flags: <defaults>
</compile_context>

<pallas_src>
import functools
import math

import jax
import jax.numpy as jnp
import numpy as np
from jax.experimental import pallas as pl
from jax.experimental.pallas import tpu as pltpu


def _round_up(x, m):
    return ((x + m - 1) // m) * m


# ----------------------------------------------------------------------------
# Pallas kernel: AttentionLayer.forward for a (S, B_TILE, H) slab of the batch.
# ----------------------------------------------------------------------------
def _attend(sent, length, wr, w, ctx, *, matmul_dtype, approx_recip):
    """One AttentionLayer over B_TILE batch elements.

    sent   : (S, BT, H)  f32 or bf16 — encoder states (native seq-major layout)
    length : (BT, 1)     f32 — valid token count per sample (prefix padding mask length)
    wr     : (BT, H)     f32 — precomputed mean_sent_batch @ W_h for these batch elements
    w      : (H, H)      matmul_dtype (pre-cast in the wrapper)
    ctx    : (1, H)      f32
    returns (BT, H) f32
    """
    S, BT, H = sent.shape

    # Multiplicative prefix mask rebuilt in-register (replaces the (S, B, 1) mask DMA).
    pos = jax.lax.broadcasted_iota(jnp.int32, (S, BT, 1), 0).astype(jnp.float32)
    mask = (pos < length[None, :, :]).astype(sent.dtype)              # (S, BT, 1)
    r = mask * sent                                                   # r_sent_batch (S, BT, H)

    # One big MXU matmul: flatten (S, BT) into the M dimension (BT is a multiple of 8 so the
    # reshape is layout-preserving). No per-step cast when the producer already emits bf16.
    r_mm = r if r.dtype == matmul_dtype else r.astype(matmul_dtype)
    wy = jnp.dot(r_mm.reshape(S * BT, H), w,
                 preferred_element_type=jnp.float32).reshape(S, BT, H)

    # TODO(synk): if the EUP tanh/exp slot becomes binding on v6e/v7x after the bf16-input change,
    # compute tanh/exp in bf16 there (keep f32 on v5e, which has no bf16 EUP path).
    m = jnp.tanh(wy + wr[None, :, :])                                 # (S, BT, H), f32

    # Context score: VPU multiply + lane reduction (no degenerate N=1 MXU matmul).
    scores = jnp.sum(m * ctx[None, :, :], axis=-1, keepdims=True)     # (S, BT, 1)

    # Softmax over the sequence axis (== F.softmax over dim 1 of the torch (B, S, 1) tensor).
    # Masked positions intentionally keep softmax mass (score = ctx·tanh(wr)), matching torch.
    s_max = jnp.max(scores, axis=0, keepdims=True)
    e = jnp.exp(scores - s_max)
    denom = jnp.sum(e, axis=0, keepdims=True)
    alpha = e * pl.reciprocal(denom, approx=approx_recip)             # (S, BT, 1)

    # out_b = sum_s alpha[s, b] * r[s, b, :]  (== bmm(alpha^T, r_sent_batch) in the module)
    return jnp.sum(alpha * r.astype(jnp.float32), axis=0)             # (BT, H) f32


def _fused_attention_kernel(p_sent_ref, h_sent_ref, p_len_ref, h_len_ref,
                            p_wr_ref, h_wr_ref, p_w_ref, h_w_ref,
                            p_ctx_ref, h_ctx_ref,
                            p_out_ref, h_out_ref,
                            *, matmul_dtype, approx_recip):
    # TODO(synk): for production H <= 64, the two matmuls could be fused into one block-diagonal
    # (S*BT, 2H) x (2H, 2H) MXU push to double MXU fill; secondary while HBM-bound, so skipped.
    p_out_ref[...] = _attend(
        p_sent_ref[...], p_len_ref[...], p_wr_ref[...], p_w_ref[...], p_ctx_ref[...],
        matmul_dtype=matmul_dtype, approx_recip=approx_recip,
    ).astype(p_out_ref.dtype)
    h_out_ref[...] = _attend(
        h_sent_ref[...], h_len_ref[...], h_wr_ref[...], h_w_ref[...], h_ctx_ref[...],
        matmul_dtype=matmul_dtype, approx_recip=approx_recip,
    ).astype(h_out_ref.dtype)


# ----------------------------------------------------------------------------
# Generation-aware sizing helpers.
# ----------------------------------------------------------------------------
def _vmem_limit_bytes():
    """~3/4 of physical VMEM: ≈96 MiB on v5e/v6e (128 MiB), ≈48 MiB on v7x (64 MiB/TC)."""
    cap = None
    try:
        cap = getattr(pltpu.get_tpu_info(), "vmem_capacity_bytes", None)
    except Exception:
        cap = None
    if not cap:
        cap = 64 * 1024 * 1024   # conservative fallback (v7x per-core figure), safe everywhere
    return int(min(max(cap * 3 // 4, 32 * 1024 * 1024), 100 * 1024 * 1024))


def _select_batch_tile(batch, seq_len, h_pad, sent_itemsize, vmem_limit, b_tile):
    """VMEM-budget-derived batch tile (multiple of 8, <= 512, >= 4 grid steps when possible)."""
    b_pad8 = _round_up(max(batch, 1), 8)
    if b_tile is not None:
        return max(8, min(_round_up(b_tile, 8), b_pad8))
    # Per batch element, per grid step:
    #   double-buffered prem+hypo input slabs : 2 slabs x 2 pipeline buffers x S x H x itemsize
    #   in-kernel intermediates (r + f32 WY/M, compiler-reused across the two layers)
    per_b = seq_len * h_pad * (4 * sent_itemsize + sent_itemsize + 8)
    bt = (vmem_limit * 3 // 4) // max(per_b, 1)
    bt = max(8, min(512, (bt // 8) * 8, b_pad8))
    # Keep >= 4 grid steps when the batch is large enough: >= 2 pipelined steps per TensorCore
    # on v7x's two-core sharding of the 'parallel' batch axis.
    if b_pad8 >= 32:
        bt = min(bt, max(8, (b_pad8 // 4) // 8 * 8))
    return bt


def _grid_invariant_spec(block_shape, index_map, single_buffer):
    """Single-buffer grid-invariant operands (weights/context) to halve their VMEM footprint."""
    if single_buffer:
        try:
            return pl.BlockSpec(block_shape, index_map, pipeline_mode=pl.Buffered(1))
        except TypeError:
            pass
    return pl.BlockSpec(block_shape, index_map)


# ----------------------------------------------------------------------------
# Wrapper: both AttentionLayers (prem + hypo) in one batch-tiled pallas_call.
# ----------------------------------------------------------------------------
def attention_layer_pair(prem_sbh, hypo_sbh, prem_mean_bh, hypo_mean_bh,
                         p_len_b, h_len_b, params_p, params_h,
                         *, b_tile=None, precise=False):
    """prem_sbh / hypo_sbh : (S, B, H) in the producer's dtype (f32 or bf16 — bf16 halves HBM)
    prem_mean_bh / hypo_mean_bh : (B, H) f32 (MeanPoolingLayer output)
    p_len_b / h_len_b : (B,) valid token counts (the module's padding-mask lengths)
    params_* : (W, W_h, context) f32
    returns (prem_repr, hypo_repr), each (B, H) f32
    """
    S, B, H = prem_sbh.shape
    assert hypo_sbh.shape == (S, B, H)
    assert hypo_sbh.dtype == prem_sbh.dtype
    mm_dtype = jnp.float32 if precise else jnp.bfloat16

    w_p, wh_p, ctx_p = params_p
    w_h, wh_h, ctx_h = params_h

    # Hoisted: WR = mean_sent_batch @ W_h, one XLA matmul over the whole batch;
    # W_h never enters VMEM at all.
    wr_p = jnp.dot(prem_mean_bh.astype(mm_dtype), wh_p.astype(mm_dtype),
                   preferred_element_type=jnp.float32)
    wr_h = jnp.dot(hypo_mean_bh.astype(mm_dtype), wh_h.astype(mm_dtype),
                   preferred_element_type=jnp.float32)

    # Lane-dense hidden dim at production sizes (no-op when H < 128 or already 128-aligned).
    h_pad = _round_up(H, 128) if (H >= 128 and H % 128) else H
    if h_pad != H:
        # TODO(synk): ideally the upstream encoder emits H already padded to 128 (this is an HBM pass).
        pad_last = lambda x: jnp.pad(x, [(0, 0)] * (x.ndim - 1) + [(0, h_pad - H)])
        prem_sbh, hypo_sbh = pad_last(prem_sbh), pad_last(hypo_sbh)
        wr_p, wr_h = pad_last(wr_p), pad_last(wr_h)
        w_p = jnp.pad(w_p, ((0, h_pad - H), (0, h_pad - H)))
        w_h = jnp.pad(w_h, ((0, h_pad - H), (0, h_pad - H)))
        ctx_p, ctx_h = pad_last(ctx_p), pad_last(ctx_h)

    # Weights / context cast ONCE here (not per grid step inside the kernel).
    w_p_mm = w_p.astype(mm_dtype)
    w_h_mm = w_h.astype(mm_dtype)
    ctx_p_f = ctx_p.astype(jnp.float32)[None, :]
    ctx_h_f = ctx_h.astype(jnp.float32)[None, :]

    # Batch tile from the generation-aware VMEM budget.
    vmem_limit = _vmem_limit_bytes()
    bt = _select_batch_tile(B, S, h_pad, prem_sbh.dtype.itemsize, vmem_limit, b_tile)
    b_pad = _round_up(B, bt)

    def pad_b(x, axis):
        if x.shape[axis] == b_pad:
            return x
        widths = [(0, 0)] * x.ndim
        widths[axis] = (0, b_pad - x.shape[axis])
        return jnp.pad(x, widths)   # padded rows: len=0, wr=0 -> r=0, out=0 -> sliced off

    p_sent = pad_b(prem_sbh, 1)
    h_sent = pad_b(hypo_sbh, 1)
    p_len = pad_b(p_len_b.astype(jnp.float32)[:, None], 0)
    h_len = pad_b(h_len_b.astype(jnp.float32)[:, None], 0)
    wr_p = pad_b(wr_p, 0)
    wr_h = pad_b(wr_h, 0)

    sent_spec = pl.BlockSpec((S, bt, h_pad), lambda b: (0, b, 0))
    len_spec = pl.BlockSpec((bt, 1), lambda b: (b, 0))
    wr_spec = pl.BlockSpec((bt, h_pad), lambda b: (b, 0))
    out_spec = pl.BlockSpec((bt, h_pad), lambda b: (b, 0))

    kernel = functools.partial(_fused_attention_kernel,
                               matmul_dtype=mm_dtype, approx_recip=not precise)

    def build(single_buffer_weights):
        w_spec = _grid_invariant_spec((h_pad, h_pad), lambda b: (0, 0), single_buffer_weights)
        ctx_spec = _grid_invariant_spec((1, h_pad), lambda b: (0, 0), single_buffer_weights)
        return pl.pallas_call(
            kernel,
            out_shape=(jax.ShapeDtypeStruct((b_pad, h_pad), jnp.float32),
                       jax.ShapeDtypeStruct((b_pad, h_pad), jnp.float32)),
            grid_spec=pltpu.PrefetchScalarGridSpec(
                num_scalar_prefetch=0,
                grid=(b_pad // bt,),
                in_specs=[sent_spec, sent_spec, len_spec, len_spec,
                          wr_spec, wr_spec, w_spec, w_spec, ctx_spec, ctx_spec],
                out_specs=[out_spec, out_spec],
            ),
            compiler_params=pltpu.CompilerParams(
                dimension_semantics=("parallel",),   # batch axis shards across v7x's 2 TCs
                vmem_limit_bytes=vmem_limit,         # ~3/4 of physical VMEM for this generation
            ),
        )

    args = (p_sent, h_sent, p_len, h_len, wr_p, wr_h, w_p_mm, w_h_mm, ctx_p_f, ctx_h_f)
    try:
        p_out, h_out = build(True)(*args)
    except Exception:
        # Fallback if this JAX/Mosaic build rejects single-buffered (Buffered(1)) operands.
        p_out, h_out = build(False)(*args)

    return p_out[:B, :H], h_out[:B, :H]


# Pure-JAX reference of AttentionLayer.forward (for correctness checking only).
def attention_layer_ref(sent_sbh, mean_bh, mask_sb, W, W_h, context):
    r = mask_sb[:, :, None] * sent_sbh                     # (S, B, H)
    r = jnp.transpose(r, (1, 0, 2))                        # (B, S, H)
    wy = jnp.einsum("bsh,hk->bsk", r, W)
    wr = jnp.einsum("bh,hk->bk", mean_bh, W_h)[:, None, :]
    m = jnp.tanh(wy + wr)
    scores = jnp.einsum("bsh,h->bs", m, context)
    alpha = jax.nn.softmax(scores, axis=1)
    return jnp.einsum("bs,bsh->bh", alpha, r)


# ----------------------------------------------------------------------------
# Parameter init (deterministic, mirrors AttentionLayer.reset_parameters).
# ----------------------------------------------------------------------------
def init_attention_params(key, hidden_x_dirs):
    stdv = 1.0 / math.sqrt(hidden_x_dirs)
    k1, k2, k3 = jax.random.split(key, 3)
    W = jax.random.uniform(k1, (hidden_x_dirs, hidden_x_dirs), jnp.float32, -stdv, stdv)
    W_h = jax.random.uniform(k2, (hidden_x_dirs, hidden_x_dirs), jnp.float32, -stdv, stdv)
    ctx = jax.random.uniform(k3, (hidden_x_dirs,), jnp.float32, -stdv, stdv)
    return W, W_h, ctx


# ----------------------------------------------------------------------------
# InnerAtt forward (post-encoder part).
# ----------------------------------------------------------------------------
# TODO(synk): WordRepresentationLayer / ContextRepresentationLayer (stacked biLSTM encoder)
# definitions were not provided; this forward starts from their outputs prem_output / hypo_output
# of shape (seq_len, batch, hidden_x_dirs). For best kernel perf the encoder should emit bf16.
def inner_att_forward(params, prem_output, hypo_output, p_mask, h_mask, *, precise=False):
    # MeanPoolingLayer: masked mean over the sequence dimension (JAX glue).
    p_len = jnp.sum(p_mask, axis=0)
    h_len = jnp.sum(h_mask, axis=0)
    p_len_c = jnp.maximum(p_len, 1.0)[:, None]
    h_len_c = jnp.maximum(h_len, 1.0)[:, None]
    prem_mean = jnp.sum(prem_output.astype(jnp.float32) * p_mask[:, :, None], axis=0) / p_len_c
    hypo_mean = jnp.sum(hypo_output.astype(jnp.float32) * h_mask[:, :, None], axis=0) / h_len_c

    # Both AttentionLayers fused into a single Pallas call (the hot path). The kernel rebuilds
    # the module's multiplicative prefix padding mask from the per-sample valid lengths.
    prem_repr, hypo_repr = attention_layer_pair(
        prem_output, hypo_output, prem_mean, hypo_mean, p_len, h_len,
        params["att_p"], params["att_h"], precise=precise)

    # TODO(synk): LinearAggregationLayer definition not provided; using
    # concat([p, h, p - h, p * h]) which matches the 4 * num_dirs * lstm_hidden dense input.
    combined = jnp.concatenate(
        [prem_repr, hypo_repr, prem_repr - hypo_repr, prem_repr * hypo_repr], axis=-1)
    # TODO(synk): DenseLayer definition not provided; plain linear head (dropout = identity in eval).
    class_activations = combined @ params["dense_w"] + params["dense_b"]
    return class_activations, prem_repr, hypo_repr


if __name__ == "__main__":
    # Small shapes consistent with the module: lstm_hidden=16, bidirectional -> H = 32.
    B, S, LSTM_HIDDEN, NUM_CLASSES = 2, 8, 16, 3
    H = 2 * LSTM_HIDDEN  # hidden_x_dirs

    key = jax.random.PRNGKey(0)
    k_prem, k_hypo, k_ap, k_ah, k_dw = jax.random.split(key, 5)

    prem_output = jax.random.normal(k_prem, (S, B, H), jnp.float32)
    hypo_output = jax.random.normal(k_hypo, (S, B, H), jnp.float32)

    # masks: (seq_len, batch), 1.0 for valid tokens, 0.0 for padding (prefix masks, as in the module)
    p_valid = jnp.array([8, 5], dtype=jnp.int32)
    h_valid = jnp.array([6, 8], dtype=jnp.int32)
    seq_idx = jnp.arange(S)[:, None]
    p_mask = (seq_idx < p_valid[None, :]).astype(jnp.float32)
    h_mask = (seq_idx < h_valid[None, :]).astype(jnp.float32)

    params = {
        "att_p": init_attention_params(k_ap, H),
        "att_h": init_attention_params(k_ah, H),
        "dense_w": jax.random.normal(k_dw, (4 * H, NUM_CLASSES), jnp.float32) * 0.05,
        "dense_b": jnp.zeros((NUM_CLASSES,), jnp.float32),
    }

    # Fast path (bf16 MXU operands + approx reciprocal), f32 encoder outputs.
    class_activations, prem_repr, hypo_repr = inner_att_forward(
        params, prem_output, hypo_output, p_mask, h_mask)
    jax.block_until_ready((class_activations, prem_repr, hypo_repr))

    # Pure-JAX f32 references.
    p_len = jnp.sum(p_mask, axis=0)
    h_len = jnp.sum(h_mask, axis=0)
    p_len_c = jnp.maximum(p_len, 1.0)[:, None]
    h_len_c = jnp.maximum(h_len, 1.0)[:, None]
    prem_mean = jnp.sum(prem_output * p_mask[:, :, None], axis=0) / p_len_c
    hypo_mean = jnp.sum(hypo_output * h_mask[:, :, None], axis=0) / h_len_c
    prem_ref = attention_layer_ref(prem_output, prem_mean, p_mask, *params["att_p"])
    hypo_ref = attention_layer_ref(hypo_output, hypo_mean, h_mask, *params["att_h"])

    # Precise path (f32 MXU operands, exact reciprocal): tight correctness check.
    prem_p, hypo_p = attention_layer_pair(
        prem_output, hypo_output, prem_mean, hypo_mean, p_len, h_len,
        params["att_p"], params["att_h"], precise=True)
    jax.block_until_ready((prem_p, hypo_p))
    np.testing.assert_allclose(np.asarray(prem_p), np.asarray(prem_ref), atol=1e-4, rtol=1e-4)
    np.testing.assert_allclose(np.asarray(hypo_p), np.asarray(hypo_ref), atol=1e-4, rtol=1e-4)

    # Fast (bf16 + approx reciprocal) path: loose sanity check against the f32 reference.
    np.testing.assert_allclose(np.asarray(prem_repr), np.asarray(prem_ref), atol=5e-2, rtol=5e-2)
    np.testing.assert_allclose(np.asarray(hypo_repr), np.asarray(hypo_ref), atol=5e-2, rtol=5e-2)

    # bf16 sequence slabs straight from the "encoder" (the review's big HBM-bytes lever):
    # no wrapper astype inside the kernel path; just feed bf16 and check loosely.
    prem_bf = prem_output.astype(jnp.bfloat16)
    hypo_bf = hypo_output.astype(jnp.bfloat16)
    prem_bf32 = prem_bf.astype(jnp.float32)
    hypo_bf32 = hypo_bf.astype(jnp.float32)
    prem_mean_bf = jnp.sum(prem_bf32 * p_mask[:, :, None], axis=0) / p_len_c
    hypo_mean_bf = jnp.sum(hypo_bf32 * h_mask[:, :, None], axis=0) / h_len_c
    prem_fb, hypo_fb = attention_layer_pair(
        prem_bf, hypo_bf, prem_mean_bf, hypo_mean_bf, p_len, h_len,
        params["att_p"], params["att_h"])
    jax.block_until_ready((prem_fb, hypo_fb))
    prem_ref_bf = attention_layer_ref(prem_bf32, prem_mean_bf, p_mask, *params["att_p"])
    hypo_ref_bf = attention_layer_ref(hypo_bf32, hypo_mean_bf, h_mask, *params["att_h"])
    np.testing.assert_allclose(np.asarray(prem_fb), np.asarray(prem_ref_bf), atol=5e-2, rtol=5e-2)
    np.testing.assert_allclose(np.asarray(hypo_fb), np.asarray(hypo_ref_bf), atol=5e-2, rtol=5e-2)

    assert class_activations.shape == (B, NUM_CLASSES)
    assert prem_repr.shape == (B, H) and hypo_repr.shape == (B, H)
    print("KERNEL_OK")
</pallas_src>

<mosaic_0001>
module attributes {stable_mosaic.version = 11 : i64} {
  func.func @_fused_attention_kernel(%arg0: i32, %arg1: memref<8x8x32xf32, #tpu.memory_space<vmem>>, %arg2: memref<8x8x32xf32, #tpu.memory_space<vmem>>, %arg3: memref<8x1xf32, #tpu.memory_space<vmem>>, %arg4: memref<8x1xf32, #tpu.memory_space<vmem>>, %arg5: memref<8x32xf32, #tpu.memory_space<vmem>>, %arg6: memref<8x32xf32, #tpu.memory_space<vmem>>, %arg7: memref<32x32xbf16, #tpu.memory_space<vmem>>, %arg8: memref<32x32xbf16, #tpu.memory_space<vmem>>, %arg9: memref<1x32xf32, #tpu.memory_space<vmem>>, %arg10: memref<1x32xf32, #tpu.memory_space<vmem>>, %arg11: memref<8x32xf32, #tpu.memory_space<vmem>>, %arg12: memref<8x32xf32, #tpu.memory_space<vmem>>) attributes {dimension_semantics = [#tpu.dimension_semantics<parallel>], iteration_bounds = array<i64: 1>, scalar_prefetch = 0 : i64, scratch_operands = 0 : i64, tpu.core_type = #tpu.core_type<tc>, window_params = [{transform_indices = @transform_0, window_bounds = array<i64: 8, 8, 32>}, {transform_indices = @transform_1, window_bounds = array<i64: 8, 8, 32>}, {transform_indices = @transform_2, window_bounds = array<i64: 8, 1>}, {transform_indices = @transform_3, window_bounds = array<i64: 8, 1>}, {transform_indices = @transform_4, window_bounds = array<i64: 8, 32>}, {transform_indices = @transform_5, window_bounds = array<i64: 8, 32>}, {pipeline_mode = #tpu.pipeline_mode<synchronous>, transform_indices = @transform_6, window_bounds = array<i64: 32, 32>}, {pipeline_mode = #tpu.pipeline_mode<synchronous>, transform_indices = @transform_7, window_bounds = array<i64: 32, 32>}, {pipeline_mode = #tpu.pipeline_mode<synchronous>, transform_indices = @transform_8, window_bounds = array<i64: 1, 32>}, {pipeline_mode = #tpu.pipeline_mode<synchronous>, transform_indices = @transform_9, window_bounds = array<i64: 1, 32>}, {transform_indices = @transform_10, window_bounds = array<i64: 8, 32>}, {transform_indices = @transform_11, window_bounds = array<i64: 8, 32>}]} {
    %c0 = arith.constant 0 : index
    %c0_0 = arith.constant 0 : index
    %c0_1 = arith.constant 0 : index
    %0 = vector.load %arg1[%c0, %c0_0, %c0_1] : memref<8x8x32xf32, #tpu.memory_space<vmem>>, vector<8x8x32xf32>
    %c0_2 = arith.constant 0 : index
    %c0_3 = arith.constant 0 : index
    %1 = vector.load %arg3[%c0_2, %c0_3] : memref<8x1xf32, #tpu.memory_space<vmem>>, vector<8x1xf32>
    %c0_4 = arith.constant 0 : index
    %c0_5 = arith.constant 0 : index
    %2 = vector.load %arg5[%c0_4, %c0_5] : memref<8x32xf32, #tpu.memory_space<vmem>>, vector<8x32xf32>
    %c0_6 = arith.constant 0 : index
    %c0_7 = arith.constant 0 : index
    %3 = vector.load %arg7[%c0_6, %c0_7] : memref<32x32xbf16, #tpu.memory_space<vmem>>, vector<32x32xbf16>
    %c0_8 = arith.constant 0 : index
    %c0_9 = arith.constant 0 : index
    %4 = vector.load %arg9[%c0_8, %c0_9] : memref<1x32xf32, #tpu.memory_space<vmem>>, vector<1x32xf32>
    %5 = tpu.iota {dimensions = array<i32: 0>} : vector<8x8x1xi32>
    %6 = arith.sitofp %5 : vector<8x8x1xi32> to vector<8x8x1xf32>
    %7 = vector.shape_cast %1 : vector<8x1xf32> to vector<1x8x1xf32>
    %8 = vector.broadcast %7 : vector<1x8x1xf32> to vector<8x8x1xf32>
    %9 = arith.cmpf olt, %6, %8 : vector<8x8x1xf32>
    %10 = arith.extui %9 : vector<8x8x1xi1> to vector<8x8x1xi32>
    %11 = arith.sitofp %10 : vector<8x8x1xi32> to vector<8x8x1xf32>
    %12 = vector.broadcast %11 : vector<8x8x1xf32> to vector<8x8x32xf32>
    %13 = arith.mulf %12, %0 : vector<8x8x32xf32>
    %14 = arith.truncf %13 : vector<8x8x32xf32> to vector<8x8x32xbf16>
    %15 = vector.shape_cast %14 : vector<8x8x32xbf16> to vector<64x32xbf16>
    %cst = arith.constant dense<0.000000e+00> : vector<64x32xf32>
    %16 = tpu.matmul %15, %3, %cst {dimension_numbers = #tpu.dot_dimension_numbers<[1], [0], [0], [1], [0, 0, 1, 1], [], []>} : vector<64x32xbf16>, vector<32x32xbf16>, vector<64x32xf32> -> vector<64x32xf32>
    %17 = vector.shape_cast %16 : vector<64x32xf32> to vector<8x8x32xf32>
    %18 = vector.shape_cast %2 : vector<8x32xf32> to vector<1x8x32xf32>
    %19 = vector.broadcast %18 : vector<1x8x32xf32> to vector<8x8x32xf32>
    %20 = arith.addf %17, %19 : vector<8x8x32xf32>
    %21 = math.tanh %20 : vector<8x8x32xf32>
    %22 = vector.shape_cast %4 : vector<1x32xf32> to vector<1x1x32xf32>
    %23 = vector.broadcast %22 : vector<1x1x32xf32> to vector<8x8x32xf32>
    %24 = arith.mulf %21, %23 : vector<8x8x32xf32>
    %cst_10 = arith.constant dense<0.000000e+00> : vector<8x8xf32>
    %25 = vector.multi_reduction <add>, %24, %cst_10 [2] : vector<8x8x32xf32> to vector<8x8xf32>
    %26 = vector.shape_cast %25 : vector<8x8xf32> to vector<8x8x1xf32>
    %cst_11 = arith.constant dense<0xFF800000> : vector<8x1xf32>
    %27 = vector.multi_reduction <maximumf>, %26, %cst_11 [0] : vector<8x8x1xf32> to vector<8x1xf32>
    %28 = vector.shape_cast %27 : vector<8x1xf32> to vector<1x8x1xf32>
    %29 = vector.broadcast %28 : vector<1x8x1xf32> to vector<8x8x1xf32>
    %30 = arith.subf %26, %29 : vector<8x8x1xf32>
    %31 = math.exp %30 : vector<8x8x1xf32>
    %cst_12 = arith.constant dense<0.000000e+00> : vector<8x1xf32>
    %32 = vector.multi_reduction <add>, %31, %cst_12 [0] : vector<8x8x1xf32> to vector<8x1xf32>
    %33 = vector.shape_cast %32 : vector<8x1xf32> to vector<1x8x1xf32>
    %34 = tpu.reciprocal %33 {approx = true} : vector<1x8x1xf32> -> vector<1x8x1xf32>
    %35 = vector.broadcast %34 : vector<1x8x1xf32> to vector<8x8x1xf32>
    %36 = arith.mulf %31, %35 : vector<8x8x1xf32>
    %37 = vector.broadcast %36 : vector<8x8x1xf32> to vector<8x8x32xf32>
    %38 = arith.mulf %37, %13 : vector<8x8x32xf32>
    %cst_13 = arith.constant dense<0.000000e+00> : vector<8x32xf32>
    %39 = vector.multi_reduction <add>, %38, %cst_13 [0] : vector<8x8x32xf32> to vector<8x32xf32>
    %c0_14 = arith.constant 0 : index
    %c0_15 = arith.constant 0 : index
    %40 = vector.load %arg11[%c0_14, %c0_15] : memref<8x32xf32, #tpu.memory_space<vmem>>, vector<8x32xf32>
    tpu.vector_store %arg11[%c0_14, %c0_15], %39 {strides = array<i32>} : memref<8x32xf32, #tpu.memory_space<vmem>>, vector<8x32xf32>,
    %c0_16 = arith.constant 0 : index
    %c0_17 = arith.constant 0 : index
    %c0_18 = arith.constant 0 : index
    %41 = vector.load %arg2[%c0_16, %c0_17, %c0_18] : memref<8x8x32xf32, #tpu.memory_space<vmem>>, vector<8x8x32xf32>
    %c0_19 = arith.constant 0 : index
    %c0_20 = arith.constant 0 : index
    %42 = vector.load %arg4[%c0_19, %c0_20] : memref<8x1xf32, #tpu.memory_space<vmem>>, vector<8x1xf32>
    %c0_21 = arith.constant 0 : index
    %c0_22 = arith.constant 0 : index
    %43 = vector.load %arg6[%c0_21, %c0_22] : memref<8x32xf32, #tpu.memory_space<vmem>>, vector<8x32xf32>
    %c0_23 = arith.constant 0 : index
    %c0_24 = arith.constant 0 : index
    %44 = vector.load %arg8[%c0_23, %c0_24] : memref<32x32xbf16, #tpu.memory_space<vmem>>, vector<32x32xbf16>
    %c0_25 = arith.constant 0 : index
    %c0_26 = arith.constant 0 : index
    %45 = vector.load %arg10[%c0_25, %c0_26] : memref<1x32xf32, #tpu.memory_space<vmem>>, vector<1x32xf32>
    %46 = tpu.iota {dimensions = array<i32: 0>} : vector<8x8x1xi32>
    %47 = arith.sitofp %46 : vector<8x8x1xi32> to vector<8x8x1xf32>
    %48 = vector.shape_cast %42 : vector<8x1xf32> to vector<1x8x1xf32>
    %49 = vector.broadcast %48 : vector<1x8x1xf32> to vector<8x8x1xf32>
    %50 = arith.cmpf olt, %47, %49 : vector<8x8x1xf32>
    %51 = arith.extui %50 : vector<8x8x1xi1> to vector<8x8x1xi32>
    %52 = arith.sitofp %51 : vector<8x8x1xi32> to vector<8x8x1xf32>
    %53 = vector.broadcast %52 : vector<8x8x1xf32> to vector<8x8x32xf32>
    %54 = arith.mulf %53, %41 : vector<8x8x32xf32>
    %55 = arith.truncf %54 : vector<8x8x32xf32> to vector<8x8x32xbf16>
    %56 = vector.shape_cast %55 : vector<8x8x32xbf16> to vector<64x32xbf16>
    %cst_27 = arith.constant dense<0.000000e+00> : vector<64x32xf32>
    %57 = tpu.matmul %56, %44, %cst_27 {dimension_numbers = #tpu.dot_dimension_numbers<[1], [0], [0], [1], [0, 0, 1, 1], [], []>} : vector<64x32xbf16>, vector<32x32xbf16>, vector<64x32xf32> -> vector<64x32xf32>
    %58 = vector.shape_cast %57 : vector<64x32xf32> to vector<8x8x32xf32>
    %59 = vector.shape_cast %43 : vector<8x32xf32> to vector<1x8x32xf32>
    %60 = vector.broadcast %59 : vector<1x8x32xf32> to vector<8x8x32xf32>
    %61 = arith.addf %58, %60 : vector<8x8x32xf32>
    %62 = math.tanh %61 : vector<8x8x32xf32>
    %63 = vector.shape_cast %45 : vector<1x32xf32> to vector<1x1x32xf32>
    %64 = vector.broadcast %63 : vector<1x1x32xf32> to vector<8x8x32xf32>
    %65 = arith.mulf %62, %64 : vector<8x8x32xf32>
    %cst_28 = arith.constant dense<0.000000e+00> : vector<8x8xf32>
    %66 = vector.multi_reduction <add>, %65, %cst_28 [2] : vector<8x8x32xf32> to vector<8x8xf32>
    %67 = vector.shape_cast %66 : vector<8x8xf32> to vector<8x8x1xf32>
    %cst_29 = arith.constant dense<0xFF800000> : vector<8x1xf32>
    %68 = vector.multi_reduction <maximumf>, %67, %cst_29 [0] : vector<8x8x1xf32> to vector<8x1xf32>
    %69 = vector.shape_cast %68 : vector<8x1xf32> to vector<1x8x1xf32>
    %70 = vector.broadcast %69 : vector<1x8x1xf32> to vector<8x8x1xf32>
    %71 = arith.subf %67, %70 : vector<8x8x1xf32>
    %72 = math.exp %71 : vector<8x8x1xf32>
    %cst_30 = arith.constant dense<0.000000e+00> : vector<8x1xf32>
    %73 = vector.multi_reduction <add>, %72, %cst_30 [0] : vector<8x8x1xf32> to vector<8x1xf32>
    %74 = vector.shape_cast %73 : vector<8x1xf32> to vector<1x8x1xf32>
    %75 = tpu.reciprocal %74 {approx = true} : vector<1x8x1xf32> -> vector<1x8x1xf32>
    %76 = vector.broadcast %75 : vector<1x8x1xf32> to vector<8x8x1xf32>
    %77 = arith.mulf %72, %76 : vector<8x8x1xf32>
    %78 = vector.broadcast %77 : vector<8x8x1xf32> to vector<8x8x32xf32>
    %79 = arith.mulf %78, %54 : vector<8x8x32xf32>
    %cst_31 = arith.constant dense<0.000000e+00> : vector<8x32xf32>
    %80 = vector.multi_reduction <add>, %79, %cst_31 [0] : vector<8x8x32xf32> to vector<8x32xf32>
    %c0_32 = arith.constant 0 : index
    %c0_33 = arith.constant 0 : index
    %81 = vector.load %arg12[%c0_32, %c0_33] : memref<8x32xf32, #tpu.memory_space<vmem>>, vector<8x32xf32>
    tpu.vector_store %arg12[%c0_32, %c0_33], %80 {strides = array<i32>} : memref<8x32xf32, #tpu.memory_space<vmem>>, vector<8x32xf32>,
    return
  }
  func.func @transform_0(%arg0: i32) -> (i32, i32, i32) {
    %c0_i32 = arith.constant 0 : i32
    %c0_i32_0 = arith.constant 0 : i32
    %c0_i32_1 = arith.constant 0 : i32
    return %c0_i32, %arg0, %c0_i32_0 : i32, i32, i32
  }
  func.func @transform_1(%arg0: i32) -> (i32, i32, i32) {
    %c0_i32 = arith.constant 0 : i32
    %c0_i32_0 = arith.constant 0 : i32
    %c0_i32_1 = arith.constant 0 : i32
    return %c0_i32, %arg0, %c0_i32_0 : i32, i32, i32
  }
  func.func @transform_2(%arg0: i32) -> (i32, i32) {
    %c0_i32 = arith.constant 0 : i32
    %c0_i32_0 = arith.constant 0 : i32
    return %arg0, %c0_i32 : i32, i32
  }
  func.func @transform_3(%arg0: i32) -> (i32, i32) {
    %c0_i32 = arith.constant 0 : i32
    %c0_i32_0 = arith.constant 0 : i32
    return %arg0, %c0_i32 : i32, i32
  }
  func.func @transform_4(%arg0: i32) -> (i32, i32) {
    %c0_i32 = arith.constant 0 : i32
    %c0_i32_0 = arith.constant 0 : i32
    return %arg0, %c0_i32 : i32, i32
  }
  func.func @transform_5(%arg0: i32) -> (i32, i32) {
    %c0_i32 = arith.constant 0 : i32
    %c0_i32_0 = arith.constant 0 : i32
    return %arg0, %c0_i32 : i32, i32
  }
  func.func @transform_6(%arg0: i32) -> (i32, i32) {
    %c0_i32 = arith.constant 0 : i32
    %c0_i32_0 = arith.constant 0 : i32
    %c0_i32_1 = arith.constant 0 : i32
    return %c0_i32, %c0_i32_0 : i32, i32
  }
  func.func @transform_7(%arg0: i32) -> (i32, i32) {
    %c0_i32 = arith.constant 0 : i32
    %c0_i32_0 = arith.constant 0 : i32
    %c0_i32_1 = arith.constant 0 : i32
    return %c0_i32, %c0_i32_0 : i32, i32
  }
  func.func @transform_8(%arg0: i32) -> (i32, i32) {
    %c0_i32 = arith.constant 0 : i32
    %c0_i32_0 = arith.constant 0 : i32
    %c0_i32_1 = arith.constant 0 : i32
    return %c0_i32, %c0_i32_0 : i32, i32
  }
  func.func @transform_9(%arg0: i32) -> (i32, i32) {
    %c0_i32 = arith.constant 0 : i32
    %c0_i32_0 = arith.constant 0 : i32
    %c0_i32_1 = arith.constant 0 : i32
    return %c0_i32, %c0_i32_0 : i32, i32
  }
  func.func @transform_10(%arg0: i32) -> (i32, i32) {
    %c0_i32 = arith.constant 0 : i32
    %c0_i32_0 = arith.constant 0 : i32
    return %arg0, %c0_i32 : i32, i32
  }
  func.func @transform_11(%arg0: i32) -> (i32, i32) {
    %c0_i32 = arith.constant 0 : i32
    %c0_i32_0 = arith.constant 0 : i32
    return %arg0, %c0_i32 : i32, i32
  }
}

module attributes {stable_mosaic.version = 11 : i64} {
  func.func @_fused_attention_kernel(%arg0: i32, %arg1: memref<8x8x32xf32, #tpu.memory_space<vmem>>, %arg2: memref<8x8x32xf32, #tpu.memory_space<vmem>>, %arg3: memref<8x1xf32, #tpu.memory_space<vmem>>, %arg4: memref<8x1xf32, #tpu.memory_space<vmem>>, %arg5: memref<8x32xf32, #tpu.memory_space<vmem>>, %arg6: memref<8x32xf32, #tpu.memory_space<vmem>>, %arg7: memref<32x32xbf16, #tpu.memory_space<vmem>>, %arg8: memref<32x32xbf16, #tpu.memory_space<vmem>>, %arg9: memref<1x32xf32, #tpu.memory_space<vmem>>, %arg10: memref<1x32xf32, #tpu.memory_space<vmem>>, %arg11: memref<8x32xf32, #tpu.memory_space<vmem>>, %arg12: memref<8x32xf32, #tpu.memory_space<vmem>>) attributes {dimension_semantics = [#tpu.dimension_semantics<parallel>], iteration_bounds = array<i64: 1>, scalar_prefetch = 0 : i64, scratch_operands = 0 : i64, tpu.core_type = #tpu.core_type<tc>, window_params = [{transform_indices = @transform_0, window_bounds = array<i64: 8, 8, 32>}, {transform_indices = @transform_1, window_bounds = array<i64: 8, 8, 32>}, {transform_indices = @transform_2, window_bounds = array<i64: 8, 1>}, {transform_indices = @transform_3, window_bounds = array<i64: 8, 1>}, {transform_indices = @transform_4, window_bounds = array<i64: 8, 32>}, {transform_indices = @transform_5, window_bounds = array<i64: 8, 32>}, {pipeline_mode = #tpu.pipeline_mode<synchronous>, transform_indices = @transform_6, window_bounds = array<i64: 32, 32>}, {pipeline_mode = #tpu.pipeline_mode<synchronous>, transform_indices = @transform_7, window_bounds = array<i64: 32, 32>}, {pipeline_mode = #tpu.pipeline_mode<synchronous>, transform_indices = @transform_8, window_bounds = array<i64: 1, 32>}, {pipeline_mode = #tpu.pipeline_mode<synchronous>, transform_indices = @transform_9, window_bounds = array<i64: 1, 32>}, {transform_indices = @transform_10, window_bounds = array<i64: 8, 32>}, {transform_indices = @transform_11, window_bounds = array<i64: 8, 32>}]} {
    %c0 = arith.constant 0 : index
    %c0_0 = arith.constant 0 : index
    %c0_1 = arith.constant 0 : index
    %0 = vector.load %arg1[%c0, %c0_0, %c0_1] : memref<8x8x32xf32, #tpu.memory_space<vmem>>, vector<8x8x32xf32>
    %c0_2 = arith.constant 0 : index
    %c0_3 = arith.constant 0 : index
    %1 = vector.load %arg3[%c0_2, %c0_3] : memref<8x1xf32, #tpu.memory_space<vmem>>, vector<8x1xf32>
    %c0_4 = arith.constant 0 : index
    %c0_5 = arith.constant 0 : index
    %2 = vector.load %arg5[%c0_4, %c0_5] : memref<8x32xf32, #tpu.memory_space<vmem>>, vector<8x32xf32>
    %c0_6 = arith.constant 0 : index
    %c0_7 = arith.constant 0 : index
    %3 = vector.load %arg7[%c0_6, %c0_7] : memref<32x32xbf16, #tpu.memory_space<vmem>>, vector<32x32xbf16>
    %c0_8 = arith.constant 0 : index
    %c0_9 = arith.constant 0 : index
    %4 = vector.load %arg9[%c0_8, %c0_9] : memref<1x32xf32, #tpu.memory_space<vmem>>, vector<1x32xf32>
    %5 = tpu.iota {dimensions = array<i32: 0>} : vector<8x8x1xi32>
    %6 = arith.sitofp %5 : vector<8x8x1xi32> to vector<8x8x1xf32>
    %7 = vector.shape_cast %1 : vector<8x1xf32> to vector<1x8x1xf32>
    %8 = vector.broadcast %7 : vector<1x8x1xf32> to vector<8x8x1xf32>
    %9 = arith.cmpf olt, %6, %8 : vector<8x8x1xf32>
    %10 = arith.extui %9 : vector<8x8x1xi1> to vector<8x8x1xi32>
    %11 = arith.sitofp %10 : vector<8x8x1xi32> to vector<8x8x1xf32>
    %12 = vector.broadcast %11 : vector<8x8x1xf32> to vector<8x8x32xf32>
    %13 = arith.mulf %12, %0 : vector<8x8x32xf32>
    %14 = arith.truncf %13 : vector<8x8x32xf32> to vector<8x8x32xbf16>
    %15 = vector.shape_cast %14 : vector<8x8x32xbf16> to vector<64x32xbf16>
    %cst = arith.constant dense<0.000000e+00> : vector<64x32xf32>
    %16 = tpu.matmul %15, %3, %cst {dimension_numbers = #tpu.dot_dimension_numbers<[1], [0], [0], [1], [0, 0, 1, 1], [], []>} : vector<64x32xbf16>, vector<32x32xbf16>, vector<64x32xf32> -> vector<64x32xf32>
    %17 = vector.shape_cast %16 : vector<64x32xf32> to vector<8x8x32xf32>
    %18 = vector.shape_cast %2 : vector<8x32xf32> to vector<1x8x32xf32>
    %19 = vector.broadcast %18 : vector<1x8x32xf32> to vector<8x8x32xf32>
    %20 = arith.addf %17, %19 : vector<8x8x32xf32>
    %21 = math.tanh %20 : vector<8x8x32xf32>
    %22 = vector.shape_cast %4 : vector<1x32xf32> to vector<1x1x32xf32>
    %23 = vector.broadcast %22 : vector<1x1x32xf32> to vector<8x8x32xf32>
    %24 = arith.mulf %21, %23 : vector<8x8x32xf32>
    %cst_10 = arith.constant dense<0.000000e+00> : vector<8x8xf32>
    %25 = vector.multi_reduction <add>, %24, %cst_10 [2] : vector<8x8x32xf32> to vector<8x8xf32>
    %26 = vector.shape_cast %25 : vector<8x8xf32> to vector<8x8x1xf32>
    %cst_11 = arith.constant dense<0xFF800000> : vector<8x1xf32>
    %27 = vector.multi_reduction <maximumf>, %26, %cst_11 [0] : vector<8x8x1xf32> to vector<8x1xf32>
    %28 = vector.shape_cast %27 : vector<8x1xf32> to vector<1x8x1xf32>
    %29 = vector.broadcast %28 : vector<1x8x1xf32> to vector<8x8x1xf32>
    %30 = arith.subf %26, %29 : vector<8x8x1xf32>
    %31 = math.exp %30 : vector<8x8x1xf32>
    %cst_12 = arith.constant dense<0.000000e+00> : vector<8x1xf32>
    %32 = vector.multi_reduction <add>, %31, %cst_12 [0] : vector<8x8x1xf32> to vector<8x1xf32>
    %33 = vector.shape_cast %32 : vector<8x1xf32> to vector<1x8x1xf32>
    %34 = tpu.reciprocal %33 {approx = true} : vector<1x8x1xf32> -> vector<1x8x1xf32>
    %35 = vector.broadcast %34 : vector<1x8x1xf32> to vector<8x8x1xf32>
    %36 = arith.mulf %31, %35 : vector<8x8x1xf32>
    %37 = vector.broadcast %36 : vector<8x8x1xf32> to vector<8x8x32xf32>
    %38 = arith.mulf %37, %13 : vector<8x8x32xf32>
    %cst_13 = arith.constant dense<0.000000e+00> : vector<8x32xf32>
    %39 = vector.multi_reduction <add>, %38, %cst_13 [0] : vector<8x8x32xf32> to vector<8x32xf32>
    %c0_14 = arith.constant 0 : index
    %c0_15 = arith.constant 0 : index
    %40 = vector.load %arg11[%c0_14, %c0_15] : memref<8x32xf32, #tpu.memory_space<vmem>>, vector<8x32xf32>
    tpu.vector_store %arg11[%c0_14, %c0_15], %39 {strides = array<i32>} : memref<8x32xf32, #tpu.memory_space<vmem>>, vector<8x32xf32>,
    %c0_16 = arith.constant 0 : index
    %c0_17 = arith.constant 0 : index
    %c0_18 = arith.constant 0 : index
    %41 = vector.load %arg2[%c0_16, %c0_17, %c0_18] : memref<8x8x32xf32, #tpu.memory_space<vmem>>, vector<8x8x32xf32>
    %c0_19 = arith.constant 0 : index
    %c0_20 = arith.constant 0 : index
    %42 = vector.load %arg4[%c0_19, %c0_20] : memref<8x1xf32, #tpu.memory_space<vmem>>, vector<8x1xf32>
    %c0_21 = arith.constant 0 : index
    %c0_22 = arith.constant 0 : index
    %43 = vector.load %arg6[%c0_21, %c0_22] : memref<8x32xf32, #tpu.memory_space<vmem>>, vector<8x32xf32>
    %c0_23 = arith.constant 0 : index
    %c0_24 = arith.constant 0 : index
    %44 = vector.load %arg8[%c0_23, %c0_24] : memref<32x32xbf16, #tpu.memory_space<vmem>>, vector<32x32xbf16>
    %c0_25 = arith.constant 0 : index
    %c0_26 = arith.constant 0 : index
    %45 = vector.load %arg10[%c0_25, %c0_26] : memref<1x32xf32, #tpu.memory_space<vmem>>, vector<1x32xf32>
    %46 = tpu.iota {dimensions = array<i32: 0>} : vector<8x8x1xi32>
    %47 = arith.sitofp %46 : vector<8x8x1xi32> to vector<8x8x1xf32>
    %48 = vector.shape_cast %42 : vector<8x1xf32> to vector<1x8x1xf32>
    %49 = vector.broadcast %48 : vector<1x8x1xf32> to vector<8x8x1xf32>
    %50 = arith.cmpf olt, %47, %49 : vector<8x8x1xf32>
    %51 = arith.extui %50 : vector<8x8x1xi1> to vector<8x8x1xi32>
    %52 = arith.sitofp %51 : vector<8x8x1xi32> to vector<8x8x1xf32>
    %53 = vector.broadcast %52 : vector<8x8x1xf32> to vector<8x8x32xf32>
    %54 = arith.mulf %53, %41 : vector<8x8x32xf32>
    %55 = arith.truncf %54 : vector<8x8x32xf32> to vector<8x8x32xbf16>
    %56 = vector.shape_cast %55 : vector<8x8x32xbf16> to vector<64x32xbf16>
    %cst_27 = arith.constant dense<0.000000e+00> : vector<64x32xf32>
    %57 = tpu.matmul %56, %44, %cst_27 {dimension_numbers = #tpu.dot_dimension_numbers<[1], [0], [0], [1], [0, 0, 1, 1], [], []>} : vector<64x32xbf16>, vector<32x32xbf16>, vector<64x32xf32> -> vector<64x32xf32>
    %58 = vector.shape_cast %57 : vector<64x32xf32> to vector<8x8x32xf32>
    %59 = vector.shape_cast %43 : vector<8x32xf32> to vector<1x8x32xf32>
    %60 = vector.broadcast %59 : vector<1x8x32xf32> to vector<8x8x32xf32>
    %61 = arith.addf %58, %60 : vector<8x8x32xf32>
    %62 = math.tanh %61 : vector<8x8x32xf32>
    %63 = vector.shape_cast %45 : vector<1x32xf32> to vector<1x1x32xf32>
    %64 = vector.broadcast %63 : vector<1x1x32xf32> to vector<8x8x32xf32>
    %65 = arith.mulf %62, %64 : vector<8x8x32xf32>
    %cst_28 = arith.constant dense<0.000000e+00> : vector<8x8xf32>
    %66 = vector.multi_reduction <add>, %65, %cst_28 [2] : vector<8x8x32xf32> to vector<8x8xf32>
    %67 = vector.shape_cast %66 : vector<8x8xf32> to vector<8x8x1xf32>
    %cst_29 = arith.constant dense<0xFF800000> : vector<8x1xf32>
    %68 = vector.multi_reduction <maximumf>, %67, %cst_29 [0] : vector<8x8x1xf32> to vector<8x1xf32>
    %69 = vector.shape_cast %68 : vector<8x1xf32> to vector<1x8x1xf32>
    %70 = vector.broadcast %69 : vector<1x8x1xf32> to vector<8x8x1xf32>
    %71 = arith.subf %67, %70 : vector<8x8x1xf32>
    %72 = math.exp %71 : vector<8x8x1xf32>
    %cst_30 = arith.constant dense<0.000000e+00> : vector<8x1xf32>
    %73 = vector.multi_reduction <add>, %72, %cst_30 [0] : vector<8x8x1xf32> to vector<8x1xf32>
    %74 = vector.shape_cast %73 : vector<8x1xf32> to vector<1x8x1xf32>
    %75 = tpu.reciprocal %74 {approx = true} : vector<1x8x1xf32> -> vector<1x8x1xf32>
    %76 = vector.broadcast %75 : vector<1x8x1xf32> to vector<8x8x1xf32>
    %77 = arith.mulf %72, %76 : vector<8x8x1xf32>
    %78 = vector.broadcast %77 : vector<8x8x1xf32> to vector<8x8x32xf32>
    %79 = arith.mulf %78, %54 : vector<8x8x32xf32>
    %cst_31 = arith.constant dense<0.000000e+00> : vector<8x32xf32>
    %80 = vector.multi_reduction <add>, %79, %cst_31 [0] : vector<8x8x32xf32> to vector<8x32xf32>
    %c0_32 = arith.constant 0 : index
    %c0_33 = arith.constant 0 : index
    %81 = vector.load %arg12[%c0_32, %c0_33] : memref<8x32xf32, #tpu.memory_space<vmem>>, vector<8x32xf32>
    tpu.vector_store %arg12[%c0_32, %c0_33], %80 {strides = array<i32>} : memref<8x32xf32, #tpu.memory_space<vmem>>, vector<8x32xf32>,
    return
  }
  func.func @transform_0(%arg0: i32) -> (i32, i32, i32) {
    %c0_i32 = arith.constant 0 : i32
    %c0_i32_0 = arith.constant 0 : i32
    %c0_i32_1 = arith.constant 0 : i32
    return %c0_i32, %arg0, %c0_i32_0 : i32, i32, i32
  }
  func.func @transform_1(%arg0: i32) -> (i32, i32, i32) {
    %c0_i32 = arith.constant 0 : i32
    %c0_i32_0 = arith.constant 0 : i32
    %c0_i32_1 = arith.constant 0 : i32
    return %c0_i32, %arg0, %c0_i32_0 : i32, i32, i32
  }
  func.func @transform_2(%arg0: i32) -> (i32, i32) {
    %c0_i32 = arith.constant 0 : i32
    %c0_i32_0 = arith.constant 0 : i32
    return %arg0, %c0_i32 : i32, i32
  }
  func.func @transform_3(%arg0: i32) -> (i32, i32) {
    %c0_i32 = arith.constant 0 : i32
    %c0_i32_0 = arith.constant 0 : i32
    return %arg0, %c0_i32 : i32, i32
  }
  func.func @transform_4(%arg0: i32) -> (i32, i32) {
    %c0_i32 = arith.constant 0 : i32
    %c0_i32_0 = arith.constant 0 : i32
    return %arg0, %c0_i32 : i32, i32
  }
  func.func @transform_5(%arg0: i32) -> (i32, i32) {
    %c0_i32 = arith.constant 0 : i32
    %c0_i32_0 = arith.constant 0 : i32
    return %arg0, %c0_i32 : i32, i32
  }
  func.func @transform_6(%arg0: i32) -> (i32, i32) {
    %c0_i32 = arith.constant 0 : i32
    %c0_i32_0 = arith.constant 0 : i32
    %c0_i32_1 = arith.constant 0 : i32
    return %c0_i32, %c0_i32_0 : i32, i32
  }
  func.func @transform_7(%arg0: i32) -> (i32, i32) {
    %c0_i32 = arith.constant 0 : i32
    %c0_i32_0 = arith.constant 0 : i32
    %c0_i32_1 = arith.constant 0 : i32
    return %c0_i32, %c0_i32_0 : i32, i32
  }
  func.func @transform_8(%arg0: i32) -> (i32, i32) {
    %c0_i32 = arith.constant 0 : i32
    %c0_i32_0 = arith.constant 0 : i32
    %c0_i32_1 = arith.constant 0 : i32
    return %c0_i32, %c0_i32_0 : i32, i32
  }
  func.func @transform_9(%arg0: i32) -> (i32, i32) {
    %c0_i32 = arith.constant 0 : i32
    %c0_i32_0 = arith.constant 0 : i32
    %c0_i32_1 = arith.constant 0 : i32
    return %c0_i32, %c0_i32_0 : i32, i32
  }
  func.func @transform_10(%arg0: i32) -> (i32, i32) {
    %c0_i32 = arith.constant 0 : i32
    %c0_i32_0 = arith.constant 0 : i32
    return %arg0, %c0_i32 : i32, i32
  }
  func.func @transform_11(%arg0: i32) -> (i32, i32) {
    %c0_i32 = arith.constant 0 : i32
    %c0_i32_0 = arith.constant 0 : i32
    return %arg0, %c0_i32 : i32, i32
  }
}

</mosaic_0001>

<llo_original>
// kernel: tpu_custom_call.1
$region0: #{tpu_custom_call.1}
  #allocation0 [shape = 'u32[]', space=smem, size = 0x4, offset = 0x4, fixed_abs, tag = 'smem constant byte address 0x4 - core index']
  #allocation1 [shape = 'u32[72,128]{1,0:T(1,128)}', space=vmem, size = 0x9000, scoped, tag = 'internal scratch']
  %s0 = inlined_call_operand.hbm [shape: f32[8,8,32], index: 0, kind: input, shape index: {}]
  %s1 = inlined_call_operand.hbm [shape: f32[8,8,32], index: 1, kind: input, shape index: {}]
  %s2 = inlined_call_operand.vmem [shape: f32[8,1], index: 2, kind: input, shape index: {}]
  %s3 = inlined_call_operand.vmem [shape: f32[8,1], index: 3, kind: input, shape index: {}]
  %s4 = inlined_call_operand.hbm [shape: f32[8,32], index: 4, kind: input, shape index: {}]
  %s5 = inlined_call_operand.hbm [shape: f32[8,32], index: 5, kind: input, shape index: {}]
  %s6 = inlined_call_operand.vmem [shape: bf16[32,32], index: 6, kind: input, shape index: {}]
  %s7 = inlined_call_operand.hbm [shape: bf16[32,32], index: 7, kind: input, shape index: {}]
  %s8 = inlined_call_operand.vmem [shape: f32[1,32], index: 8, kind: input, shape index: {}]
  %s9 = inlined_call_operand.vmem [shape: f32[1,32], index: 9, kind: input, shape index: {}]
  %s10 = inlined_call_operand.hbm [shape: f32[8,32], index: 10, kind: output, shape index: {0}]
  %s11 = inlined_call_operand.hbm [shape: f32[8,32], index: 11, kind: output, shape index: {1}]
  %12 = xla_tuple %s10, %s11
  %s13 = sld [smem:[#allocation0]]
  $region78: #{tpu_custom_call.1} parent=0
    _
  %s15 = ssub.s32 1, %s13
  %s16 = scalar_select 0, %s15, %s13
  $region1: #{tpu_custom_call.1} parent=0
    #allocation2 [shape = 'u8[32768]{0}', space=vmem, size = 0x8000, scoped, tag = 'input window, operand 0, single buffered']
    #allocation3 [shape = 's32[1]{0}', space=sflag, size = 0x4, scoped, tag = 'scoped memory for tpu_custom_call.1']
    #allocation4 [shape = 's32[1]{0}', space=sflag, size = 0x4, scoped, tag = 'scoped memory for tpu_custom_call.1']
    #allocation5 [shape = 'u8[32768]{0}', space=vmem, size = 0x8000, scoped, tag = 'input window, operand 1, single buffered']
    #allocation6 [shape = 's32[1]{0}', space=sflag, size = 0x4, scoped, tag = 'scoped memory for tpu_custom_call.1']
    #allocation7 [shape = 'u8[4096]{0}', space=vmem, size = 0x1000, scoped, tag = 'input window, operand 4, single buffered']
    #allocation8 [shape = 'u8[4096]{0}', space=vmem, size = 0x1000, scoped, tag = 'input window, operand 5, single buffered']
    #allocation9 [shape = 's32[1]{0}', space=sflag, size = 0x4, scoped, tag = 'scoped memory for tpu_custom_call.1']
    #allocation10 [shape = 'u8[8192]{0}', space=vmem, size = 0x2000, scoped, tag = 'input window, operand 7, single buffered']
    #allocation11 [shape = 'u8[4096]{0}', space=vmem, size = 0x1000, scoped, tag = 'output window, operand 0, single buffered']
    #allocation12 [shape = 'u8[4096]{0}', space=vmem, size = 0x1000, scoped, tag = 'output window, operand 1, single buffered']
    #allocation13 [shape = 's32[1]{0}', space=sflag, size = 0x4, scoped, tag = 'scoped memory for tpu_custom_call.1']
    %17 = vsyncpa [#allocation3], 0
    %18 = vsyncpa [#allocation6], 0
    %19 = vsyncpa [#allocation9], 0
    %20 = vsyncpa [#allocation4], 0
    %21 = vsyncpa [#allocation13], 0
    // Predicated region
    $region2: #{tpu_custom_call.1} parent=1 // pred_check
      _
    $region3: #{tpu_custom_call.1} parent=1 // pred_check_branch
      %23 = sbr.rel (0) target = $region5
    $region4: #{tpu_custom_call.1} parent=1 // pred_region
      %25 = vsyncadd [#allocation3], 0
      %s26 = sshll.u32 %s0, 4
      %s27 = int_to_ptr.hbm [resolvable:$true] %s26
      %s28 = sshll.u32 [#allocation2], 4
      %s29 = int_to_ptr.vmem [resolvable:$true] %s28
      %34 = dma.hbm_to_vmem [thread:$0]  %s27, 1024, %s29, [#allocation3], 128, 128, 8
    $region5: #{tpu_custom_call.1} parent=1 // pred_fallthru
      _
    // Predicated region
    $region6: #{tpu_custom_call.1} parent=1 // pred_check
      _
    $region7: #{tpu_custom_call.1} parent=1 // pred_check_branch
      %36 = sbr.rel (0) target = $region9
    $region8: #{tpu_custom_call.1} parent=1 // pred_region
      %38 = vsyncadd [#allocation6], 0
      %s39 = sshll.u32 %s1, 4
      %s40 = int_to_ptr.hbm [resolvable:$true] %s39
      %s41 = sshll.u32 [#allocation5], 4
      %s42 = int_to_ptr.vmem [resolvable:$true] %s41
      %47 = dma.hbm_to_vmem [thread:$0]  %s40, 1024, %s42, [#allocation6], 128, 128, 8
    $region9: #{tpu_custom_call.1} parent=1 // pred_fallthru
      _
    // Predicated region
    $region10: #{tpu_custom_call.1} parent=1 // pred_check
      _
    $region11: #{tpu_custom_call.1} parent=1 // pred_check_branch
      %49 = sbr.rel (0) target = $region13
    $region12: #{tpu_custom_call.1} parent=1 // pred_region
      _
    $region13: #{tpu_custom_call.1} parent=1 // pred_fallthru
      _
    // Predicated region
    $region14: #{tpu_custom_call.1} parent=1 // pred_check
      _
    $region15: #{tpu_custom_call.1} parent=1 // pred_check_branch
      %51 = sbr.rel (0) target = $region17
    $region16: #{tpu_custom_call.1} parent=1 // pred_region
      _
    $region17: #{tpu_custom_call.1} parent=1 // pred_fallthru
      _
    // Predicated region
    $region18: #{tpu_custom_call.1} parent=1 // pred_check
      _
    $region19: #{tpu_custom_call.1} parent=1 // pred_check_branch
      %53 = sbr.rel (0) target = $region21
    $region20: #{tpu_custom_call.1} parent=1 // pred_region
      %55 = vsyncadd [#allocation6], 0
      %s57 = sshll.u32 %s4, 4
      %s58 = int_to_ptr.hbm [resolvable:$true] %s57
      %s59 = sshll.u32 [#allocation7], 4
      %s60 = int_to_ptr.vmem [resolvable:$true] %s59
      %62 = dma.hbm_to_vmem [thread:$0]  %s58, 128, %s60, [#allocation6]
    $region21: #{tpu_custom_call.1} parent=1 // pred_fallthru
      _
    // Predicated region
    $region22: #{tpu_custom_call.1} parent=1 // pred_check
      _
    $region23: #{tpu_custom_call.1} parent=1 // pred_check_branch
      %64 = sbr.rel (0) target = $region25
    $region24: #{tpu_custom_call.1} parent=1 // pred_region
      %66 = vsyncadd [#allocation9], 0
      %s68 = sshll.u32 %s5, 4
      %s69 = int_to_ptr.hbm [resolvable:$true] %s68
      %s70 = sshll.u32 [#allocation8], 4
      %s71 = int_to_ptr.vmem [resolvable:$true] %s70
      %73 = dma.hbm_to_vmem [thread:$0]  %s69, 128, %s71, [#allocation9]
    $region25: #{tpu_custom_call.1} parent=1 // pred_fallthru
      _
    // Predicated region
    $region26: #{tpu_custom_call.1} parent=1 // pred_check
      _
    $region27: #{tpu_custom_call.1} parent=1 // pred_check_branch
      %75 = sbr.rel (0) target = $region29
    $region28: #{tpu_custom_call.1} parent=1 // pred_region
      _
    $region29: #{tpu_custom_call.1} parent=1 // pred_fallthru
      _
    // Predicated region
    $region30: #{tpu_custom_call.1} parent=1 // pred_check
      _
    $region31: #{tpu_custom_call.1} parent=1 // pred_check_branch
      %77 = sbr.rel (0) target = $region33
    $region32: #{tpu_custom_call.1} parent=1 // pred_region
      %79 = vsyncadd [#allocation9], 0
      %s80 = sshll.u32 %s7, 4
      %s81 = int_to_ptr.hbm [resolvable:$true] %s80
      %s82 = sshll.u32 [#allocation10], 4
      %s83 = int_to_ptr.vmem [resolvable:$true] %s82
      %88 = dma.hbm_to_vmem [thread:$0]  %s81, 256, %s83, [#allocation9], 64, 64, 4
    $region33: #{tpu_custom_call.1} parent=1 // pred_fallthru
      _
    // Predicated region
    $region34: #{tpu_custom_call.1} parent=1 // pred_check
      _
    $region35: #{tpu_custom_call.1} parent=1 // pred_check_branch
      %90 = sbr.rel (0) target = $region37
    $region36: #{tpu_custom_call.1} parent=1 // pred_region
      _
    $region37: #{tpu_custom_call.1} parent=1 // pred_fallthru
      _
    // Predicated region
    $region38: #{tpu_custom_call.1} parent=1 // pred_check
      _
    $region39: #{tpu_custom_call.1} parent=1 // pred_check_branch
      %92 = sbr.rel (0) target = $region41
    $region40: #{tpu_custom_call.1} parent=1 // pred_region
      _
    $region41: #{tpu_custom_call.1} parent=1 // pred_fallthru
      _
    // Predicated region
    $region42: #{tpu_custom_call.1} parent=1 // pred_check
      _
    $region43: #{tpu_custom_call.1} parent=1 // pred_check_branch
      %94 = sbr.rel (0) target = $region45
    $region44: #{tpu_custom_call.1} parent=1 // pred_region
      %96 = dma.done [#allocation3], 1024
    $region45: #{tpu_custom_call.1} parent=1 // pred_fallthru
      _
    // Predicated region
    $region46: #{tpu_custom_call.1} parent=1 // pred_check
      _
    $region47: #{tpu_custom_call.1} parent=1 // pred_check_branch
      %98 = sbr.rel (0) target = $region49
    $region48: #{tpu_custom_call.1} parent=1 // pred_region
      %100 = dma.done [#allocation6], 1024
    $region49: #{tpu_custom_call.1} parent=1 // pred_fallthru
      _
    // Predicated region
    $region50: #{tpu_custom_call.1} parent=1 // pred_check
      _
    $region51: #{tpu_custom_call.1} parent=1 // pred_check_branch
      %102 = sbr.rel (0) target = $region53
    $region52: #{tpu_custom_call.1} parent=1 // pred_region
      %104 = dma.done [#allocation6], 128
    $region53: #{tpu_custom_call.1} parent=1 // pred_fallthru
      _
    // Predicated region
    $region54: #{tpu_custom_call.1} parent=1 // pred_check
      _
    $region55: #{tpu_custom_call.1} parent=1 // pred_check_branch
      %106 = sbr.rel (0) target = $region57
    $region56: #{tpu_custom_call.1} parent=1 // pred_region
      %108 = dma.done [#allocation9], 128
    $region57: #{tpu_custom_call.1} parent=1 // pred_fallthru
      _
    // Predicated region
    $region58: #{tpu_custom_call.1} parent=1 // pred_check
      _
    $region59: #{tpu_custom_call.1} parent=1 // pred_check_branch
      %110 = sbr.rel (0) target = $region61
    $region60: #{tpu_custom_call.1} parent=1 // pred_region
      %112 = dma.done [#allocation9], 256
    $region61: #{tpu_custom_call.1} parent=1 // pred_fallthru
      _
    %v114 = vld [vmem:[#allocation2] sm:$0xff]
    %v115 = vld [vmem:[#allocation2 + $0x8] sm:$0xff]
    %v116 = vld [vmem:[#allocation2 + $0x10] sm:$0xff]
    %v117 = vld [vmem:[#allocation2 + $0x18] sm:$0xff]
    %v118 = vld [vmem:[#allocation2 + $0x20] sm:$0xff]
    %v119 = vld [vmem:[#allocation2 + $0x28] sm:$0xff]
    %v120 = vld [vmem:[#allocation2 + $0x30] sm:$0xff]
    %v121 = vld [vmem:[#allocation2 + $0x38] sm:$0xff]
    %v122 = vld [vmem:[%s2] sm:$0xff]
    %v123 = vld [vmem:[#allocation7] sm:$0xff]
    %v124 = vld [vmem:[%s6] sm:$0xf]
    %v125 = vld [vmem:[%s6 + $0x4] sm:$0xf]
    %v126 = vld [vmem:[%s6 + $0x8] sm:$0xf]
    %v127 = vld [vmem:[%s6 + $0xc] sm:$0xf]
    %v128 = vld [vmem:[%s8] sm:$0x1]
    %v129 = vcvt.s32.f32 0
    %v130 = vcvt.s32.f32 1
    %v131 = vcvt.s32.f32 2
    %v132 = vcvt.s32.f32 3
    %v133 = vcvt.s32.f32 4
    %v134 = vcvt.s32.f32 5
    %v135 = vcvt.s32.f32 6
    %v136 = vcvt.s32.f32 7
    %vm137 = vcmp.lt.f32.partialorder %v129, %v122
    %vm138 = vcmp.lt.f32.partialorder %v130, %v122
    %vm139 = vcmp.lt.f32.partialorder %v131, %v122
    %vm140 = vcmp.lt.f32.partialorder %v132, %v122
    %vm141 = vcmp.lt.f32.partialorder %v133, %v122
    %vm142 = vcmp.lt.f32.partialorder %v134, %v122
    %vm143 = vcmp.lt.f32.partialorder %v135, %v122
    %vm144 = vcmp.lt.f32.partialorder %v136, %v122
    %v145 = vsel %vm137, 1, 0
    %v146 = vsel %vm138, 1, 0
    %v147 = vsel %vm139, 1, 0
    %v148 = vsel %vm140, 1, 0
    %v149 = vsel %vm141, 1, 0
    %v150 = vsel %vm142, 1, 0
    %v151 = vsel %vm143, 1, 0
    %v152 = vsel %vm144, 1, 0
    %v153 = vcvt.s32.f32 %v145
    %v154 = vcvt.s32.f32 %v146
    %v155 = vcvt.s32.f32 %v147
    %v156 = vcvt.s32.f32 %v148
    %v157 = vcvt.s32.f32 %v149
    %v158 = vcvt.s32.f32 %v150
    %v159 = vcvt.s32.f32 %v151
    %v160 = vcvt.s32.f32 %v152
    %162 = vset.pattern.permute.xlu0 0
    %163 = vperm.xlu0 %162, %v153
    %v164 = vpop.permute.xlu0 %163
    %167 = vset.pattern.permute.xlu0 0
    %168 = vperm.xlu0 %167, %v154
    %v169 = vpop.permute.xlu0 %168
    %172 = vset.pattern.permute.xlu0 0
    %173 = vperm.xlu0 %172, %v155
    %v174 = vpop.permute.xlu0 %173
    %177 = vset.pattern.permute.xlu0 0
    %178 = vperm.xlu0 %177, %v156
    %v179 = vpop.permute.xlu0 %178
    %182 = vset.pattern.permute.xlu0 0
    %183 = vperm.xlu0 %182, %v157
    %v184 = vpop.permute.xlu0 %183
    %187 = vset.pattern.permute.xlu0 0
    %188 = vperm.xlu0 %187, %v158
    %v189 = vpop.permute.xlu0 %188
    %192 = vset.pattern.permute.xlu0 0
    %193 = vperm.xlu0 %192, %v159
    %v194 = vpop.permute.xlu0 %193
    %197 = vset.pattern.permute.xlu0 0
    %198 = vperm.xlu0 %197, %v160
    %v199 = vpop.permute.xlu0 %198
    %v201 = vmul.f32 %v164, %v114
    %v202 = vmul.f32 %v169, %v115
    %v203 = vmul.f32 %v174, %v116
    %v204 = vmul.f32 %v179, %v117
    %v205 = vmul.f32 %v184, %v118
    %v206 = vmul.f32 %v189, %v119
    %v207 = vmul.f32 %v194, %v120
    %v208 = vmul.f32 %v199, %v121
    %v209 = vpack.c.bf16 %v201, %v201
    %v210 = vpack.c.bf16 %v202, %v202
    %v211 = vpack.c.bf16 %v203, %v203
    %v212 = vpack.c.bf16 %v204, %v204
    %v213 = vpack.c.bf16 %v205, %v205
    %v214 = vpack.c.bf16 %v206, %v206
    %v215 = vpack.c.bf16 %v207, %v207
    %v216 = vpack.c.bf16 %v208, %v208
    %v225 = vunpack.c.l.b16 %v209
    %v226 = vunpack.c.l.b16 %v210
    %v227 = vunpack.c.l.b16 %v211
    %v228 = vunpack.c.l.b16 %v212
    %v229 = vunpack.c.l.b16 %v213
    %v230 = vunpack.c.l.b16 %v214
    %v231 = vunpack.c.l.b16 %v215
    %v232 = vunpack.c.l.b16 %v216
    %v233 = vpack.c.b16 %v226, %v225
    %v234 = vpack.c.b16 %v228, %v227
    %v235 = vpack.c.b16 %v230, %v229
    %v236 = vpack.c.b16 %v232, %v231
    %v241 = vunpack.c.l.b16 %v124
    %v242 = vunpack.c.l.b16 %v125
    %v243 = vunpack.c.l.b16 %v126
    %v244 = vunpack.c.l.b16 %v127
    %v245 = vpack.c.b16 %v242, %v241
    %v246 = vpack.c.b16 %v244, %v243
    %vm249 = vcmask 261120
    %v251 = vsel %vm249, %v233, 0
    %v254 = vsel %vm249, %v234, 0
    %v257 = vsel %vm249, %v235, 0
    %v260 = vsel %vm249, %v236, 0
    %262 = vmatpush.bf16.msra.mxu0 0
    %263 = vmatpush.bf16.msra.mxu0 0
    %264 = vmatpush.bf16.msra.mxu0 0
    %265 = vmatpush.bf16.msra.mxu0 0
    %266 = vmatpush.bf16.msra.mxu0 0
    %267 = vmatpush.bf16.msra.mxu0 0
    %268 = vmatpush.bf16.msra.mxu0 %v246
    %269 = vmatpush.bf16.msra.mxu0 %v245
    %270 = vmatmul.bf16.gmra.mxu0 %v251
    %v271 = vpop.f32.mrf.mxu0
    %v272 = vadd.f32 0.0, %v271
    %v273 = vpop.f32.mrf.mxu0
    %v274 = vadd.f32 0.0, %v273
    %275 = vmatmul.bf16.gmra.mxu0 %v254
    %v276 = vpop.f32.mrf.mxu0
    %v277 = vadd.f32 0.0, %v276
    %v278 = vpop.f32.mrf.mxu0
    %v279 = vadd.f32 0.0, %v278
    %280 = vmatmul.bf16.gmra.mxu0 %v257
    %v281 = vpop.f32.mrf.mxu0
    %v282 = vadd.f32 0.0, %v281
    %v283 = vpop.f32.mrf.mxu0
    %v284 = vadd.f32 0.0, %v283
    %285 = vmatmul.bf16.gmra.mxu0 %v260
    %v286 = vpop.f32.mrf.mxu0
    %v287 = vadd.f32 0.0, %v286
    %v288 = vpop.f32.mrf.mxu0
    %v289 = vadd.f32 0.0, %v288
    %290 = vdwg.mxu0
    %v291 = vadd.f32 %v272, %v123
    %v292 = vadd.f32 %v274, %v123
    %v293 = vadd.f32 %v277, %v123
    %v294 = vadd.f32 %v279, %v123
    %v295 = vadd.f32 %v282, %v123
    %v296 = vadd.f32 %v284, %v123
    %v297 = vadd.f32 %v287, %v123
    %v298 = vadd.f32 %v289, %v123
    %v299 = vtanh.pop %v291
    %v300 = vtanh.pop %v292
    %v301 = vtanh.pop %v293
    %v302 = vtanh.pop %v294
    %v303 = vtanh.pop %v295
    %v304 = vtanh.pop %v296
    %v305 = vtanh.pop %v297
    %v306 = vtanh.pop %v298
    %v308 = vperm.slane %v128, 0
    %v310 = vmul.f32 %v299, %v308
    %v311 = vmul.f32 %v300, %v308
    %v312 = vmul.f32 %v301, %v308
    %v313 = vmul.f32 %v302, %v308
    %v314 = vmul.f32 %v303, %v308
    %v315 = vmul.f32 %v304, %v308
    %v316 = vmul.f32 %v305, %v308
    %v317 = vmul.f32 %v306, %v308
    %v318 = vsel %vm249, %v310, 0.0
    %319 = vadd.xlane.f32.xlu0 %v318
    %v320 = vpop.xlane.xlu0 %319
    %v321 = vsel %vm249, %v311, 0.0
    %322 = vadd.xlane.f32.xlu0 %v321
    %v323 = vpop.xlane.xlu0 %322
    %v324 = vsel %vm249, %v312, 0.0
    %325 = vadd.xlane.f32.xlu0 %v324
    %v326 = vpop.xlane.xlu0 %325
    %v327 = vsel %vm249, %v313, 0.0
    %328 = vadd.xlane.f32.xlu0 %v327
    %v329 = vpop.xlane.xlu0 %328
    %v330 = vsel %vm249, %v314, 0.0
    %331 = vadd.xlane.f32.xlu0 %v330
    %v332 = vpop.xlane.xlu0 %331
    %v333 = vsel %vm249, %v315, 0.0
    %334 = vadd.xlane.f32.xlu0 %v333
    %v335 = vpop.xlane.xlu0 %334
    %v336 = vsel %vm249, %v316, 0.0
    %337 = vadd.xlane.f32.xlu0 %v336
    %v338 = vpop.xlane.xlu0 %337
    %v339 = vsel %vm249, %v317, 0.0
    %340 = vadd.xlane.f32.xlu0 %v339
    %v341 = vpop.xlane.xlu0 %340
    %v342 = vmax.f32 %v320, %v332
    %v343 = vmax.f32 %v323, %v335
    %v344 = vmax.f32 %v326, %v338
    %v345 = vmax.f32 %v329, %v341
    %v346 = vmax.f32 %v342, %v343
    %v347 = vmax.f32 %v344, %v345
    %v348 = vmax.f32 %v346, %v347
    %v349 = vsub.f32 %v320, %v348
    %v350 = vsub.f32 %v323, %v348
    %v351 = vsub.f32 %v326, %v348
    %v352 = vsub.f32 %v329, %v348
    %v353 = vsub.f32 %v332, %v348
    %v354 = vsub.f32 %v335, %v348
    %v355 = vsub.f32 %v338, %v348
    %v356 = vsub.f32 %v341, %v348
    %v357 = vmul.f32 %v349, 1.442695
    %v358 = vpow.pop %v357
    %v359 = vmul.f32 %v350, 1.442695
    %v360 = vpow.pop %v359
    %v361 = vmul.f32 %v351, 1.442695
    %v362 = vpow.pop %v361
    %v363 = vmul.f32 %v352, 1.442695
    %v364 = vpow.pop %v363
    %v365 = vmul.f32 %v353, 1.442695
    %v366 = vpow.pop %v365
    %v367 = vmul.f32 %v354, 1.442695
    %v368 = vpow.pop %v367
    %v369 = vmul.f32 %v355, 1.442695
    %v370 = vpow.pop %v369
    %v371 = vmul.f32 %v356, 1.442695
    %v372 = vpow.pop %v371
    %v373 = vadd.f32 %v358, %v360
    %v374 = vadd.f32 %v373, %v362
    %v375 = vadd.f32 %v374, %v364
    %v376 = vadd.f32 %v375, %v366
    %v377 = vadd.f32 %v376, %v368
    %v378 = vadd.f32 %v377, %v370
    %v379 = vadd.f32 %v378, %v372
    %v380 = vrcp.pop %v379
    %v381 = vmul.f32 %v358, %v380
    %v382 = vmul.f32 %v360, %v380
    %v383 = vmul.f32 %v362, %v380
    %v384 = vmul.f32 %v364, %v380
    %v385 = vmul.f32 %v366, %v380
    %v386 = vmul.f32 %v368, %v380
    %v387 = vmul.f32 %v370, %v380
    %v388 = vmul.f32 %v372, %v380
    %v389 = vmul.f32 %v381, %v201
    %v390 = vmul.f32 %v382, %v202
    %v391 = vmul.f32 %v383, %v203
    %v392 = vmul.f32 %v384, %v204
    %v393 = vmul.f32 %v385, %v205
    %v394 = vmul.f32 %v386, %v206
    %v395 = vmul.f32 %v387, %v207
    %v396 = vmul.f32 %v388, %v208
    %v397 = vsel %vm249, %v389, 0.0
    %v398 = vsel %vm249, %v390, 0.0
    %v399 = vadd.f32 %v397, %v398
    %v400 = vsel %vm249, %v391, 0.0
    %v401 = vadd.f32 %v399, %v400
    %v402 = vsel %vm249, %v392, 0.0
    %v403 = vadd.f32 %v401, %v402
    %v404 = vsel %vm249, %v393, 0.0
    %v405 = vadd.f32 %v403, %v404
    %v406 = vsel %vm249, %v394, 0.0
    %v407 = vadd.f32 %v405, %v406
    %v408 = vsel %vm249, %v395, 0.0
    %v409 = vadd.f32 %v407, %v408
    %v410 = vsel %vm249, %v396, 0.0
    %v411 = vadd.f32 %v409, %v410
    %412 = vst.msk [vmem:[#allocation11] sm:$0xff] %vm249, %v411
    %v413 = vld [vmem:[#allocation5] sm:$0xff]
    %v414 = vld [vmem:[#allocation5 + $0x8] sm:$0xff]
    %v415 = vld [vmem:[#allocation5 + $0x10] sm:$0xff]
    %v416 = vld [vmem:[#allocation5 + $0x18] sm:$0xff]
    %v417 = vld [vmem:[#allocation5 + $0x20] sm:$0xff]
    %v418 = vld [vmem:[#allocation5 + $0x28] sm:$0xff]
    %v419 = vld [vmem:[#allocation5 + $0x30] sm:$0xff]
    %v420 = vld [vmem:[#allocation5 + $0x38] sm:$0xff]
    %v421 = vld [vmem:[%s3] sm:$0xff]
    %v422 = vld [vmem:[#allocation8] sm:$0xff]
    %v423 = vld [vmem:[#allocation10] sm:$0xf]
    %v424 = vld [vmem:[#allocation10 + $0x4] sm:$0xf]
    %v425 = vld [vmem:[#allocation10 + $0x8] sm:$0xf]
    %v426 = vld [vmem:[#allocation10 + $0xc] sm:$0xf]
    %v427 = vld [vmem:[%s9] sm:$0x1]
    %vm428 = vcmp.lt.f32.partialorder %v129, %v421
    %vm429 = vcmp.lt.f32.partialorder %v130, %v421
    %vm430 = vcmp.lt.f32.partialorder %v131, %v421
    %vm431 = vcmp.lt.f32.partialorder %v132, %v421
    %vm432 = vcmp.lt.f32.partialorder %v133, %v421
    %vm433 = vcmp.lt.f32.partialorder %v134, %v421
    %vm434 = vcmp.lt.f32.partialorder %v135, %v421
    %vm435 = vcmp.lt.f32.partialorder %v136, %v421
    %v436 = vsel %vm428, 1, 0
    %v437 = vsel %vm429, 1, 0
    %v438 = vsel %vm430, 1, 0
    %v439 = vsel %vm431, 1, 0
    %v440 = vsel %vm432, 1, 0
    %v441 = vsel %vm433, 1, 0
    %v442 = vsel %vm434, 1, 0
    %v443 = vsel %vm435, 1, 0
    %v444 = vcvt.s32.f32 %v436
    %v445 = vcvt.s32.f32 %v437
    %v446 = vcvt.s32.f32 %v438
    %v447 = vcvt.s32.f32 %v439
    %v448 = vcvt.s32.f32 %v440
    %v449 = vcvt.s32.f32 %v441
    %v450 = vcvt.s32.f32 %v442
    %v451 = vcvt.s32.f32 %v443
    %453 = vset.pattern.permute.xlu0 0
    %454 = vperm.xlu0 %453, %v444
    %v455 = vpop.permute.xlu0 %454
    %458 = vset.pattern.permute.xlu0 0
    %459 = vperm.xlu0 %458, %v445
    %v460 = vpop.permute.xlu0 %459
    %463 = vset.pattern.permute.xlu0 0
    %464 = vperm.xlu0 %463, %v446
    %v465 = vpop.permute.xlu0 %464
    %468 = vset.pattern.permute.xlu0 0
    %469 = vperm.xlu0 %468, %v447
    %v470 = vpop.permute.xlu0 %469
    %473 = vset.pattern.permute.xlu0 0
    %474 = vperm.xlu0 %473, %v448
    %v475 = vpop.permute.xlu0 %474
    %478 = vset.pattern.permute.xlu0 0
    %479 = vperm.xlu0 %478, %v449
    %v480 = vpop.permute.xlu0 %479
    %483 = vset.pattern.permute.xlu0 0
    %484 = vperm.xlu0 %483, %v450
    %v485 = vpop.permute.xlu0 %484
    %488 = vset.pattern.permute.xlu0 0
    %489 = vperm.xlu0 %488, %v451
    %v490 = vpop.permute.xlu0 %489
    %v492 = vmul.f32 %v455, %v413
    %v493 = vmul.f32 %v460, %v414
    %v494 = vmul.f32 %v465, %v415
    %v495 = vmul.f32 %v470, %v416
    %v496 = vmul.f32 %v475, %v417
    %v497 = vmul.f32 %v480, %v418
    %v498 = vmul.f32 %v485, %v419
    %v499 = vmul.f32 %v490, %v420
    %v500 = vpack.c.bf16 %v492, %v492
    %v501 = vpack.c.bf16 %v493, %v493
    %v502 = vpack.c.bf16 %v494, %v494
    %v503 = vpack.c.bf16 %v495, %v495
    %v504 = vpack.c.bf16 %v496, %v496
    %v505 = vpack.c.bf16 %v497, %v497
    %v506 = vpack.c.bf16 %v498, %v498
    %v507 = vpack.c.bf16 %v499, %v499
    %v516 = vunpack.c.l.b16 %v500
    %v517 = vunpack.c.l.b16 %v501
    %v518 = vunpack.c.l.b16 %v502
    %v519 = vunpack.c.l.b16 %v503
    %v520 = vunpack.c.l.b16 %v504
    %v521 = vunpack.c.l.b16 %v505
    %v522 = vunpack.c.l.b16 %v506
    %v523 = vunpack.c.l.b16 %v507
    %v524 = vpack.c.b16 %v517, %v516
    %v525 = vpack.c.b16 %v519, %v518
    %v526 = vpack.c.b16 %v521, %v520
    %v527 = vpack.c.b16 %v523, %v522
    %v532 = vunpack.c.l.b16 %v423
    %v533 = vunpack.c.l.b16 %v424
    %v534 = vunpack.c.l.b16 %v425
    %v535 = vunpack.c.l.b16 %v426
    %v536 = vpack.c.b16 %v533, %v532
    %v537 = vpack.c.b16 %v535, %v534
    %v541 = vsel %vm249, %v524, 0
    %v544 = vsel %vm249, %v525, 0
    %v547 = vsel %vm249, %v526, 0
    %v550 = vsel %vm249, %v527, 0
    %552 = vmatpush.bf16.msra.mxu0 0
    %553 = vmatpush.bf16.msra.mxu0 0
    %554 = vmatpush.bf16.msra.mxu0 0
    %555 = vmatpush.bf16.msra.mxu0 0
    %556 = vmatpush.bf16.msra.mxu0 0
    %557 = vmatpush.bf16.msra.mxu0 0
    %558 = vmatpush.bf16.msra.mxu0 %v537
    %559 = vmatpush.bf16.msra.mxu0 %v536
    %560 = vmatmul.bf16.gmra.mxu0 %v541
    %v561 = vpop.f32.mrf.mxu0
    %v562 = vadd.f32 0.0, %v561
    %v563 = vpop.f32.mrf.mxu0
    %v564 = vadd.f32 0.0, %v563
    %565 = vmatmul.bf16.gmra.mxu0 %v544
    %v566 = vpop.f32.mrf.mxu0
    %v567 = vadd.f32 0.0, %v566
    %v568 = vpop.f32.mrf.mxu0
    %v569 = vadd.f32 0.0, %v568
    %570 = vmatmul.bf16.gmra.mxu0 %v547
    %v571 = vpop.f32.mrf.mxu0
    %v572 = vadd.f32 0.0, %v571
    %v573 = vpop.f32.mrf.mxu0
    %v574 = vadd.f32 0.0, %v573
    %575 = vmatmul.bf16.gmra.mxu0 %v550
    %v576 = vpop.f32.mrf.mxu0
    %v577 = vadd.f32 0.0, %v576
    %v578 = vpop.f32.mrf.mxu0
    %v579 = vadd.f32 0.0, %v578
    %580 = vdwg.mxu0
    %v581 = vadd.f32 %v562, %v422
    %v582 = vadd.f32 %v564, %v422
    %v583 = vadd.f32 %v567, %v422
    %v584 = vadd.f32 %v569, %v422
    %v585 = vadd.f32 %v572, %v422
    %v586 = vadd.f32 %v574, %v422
    %v587 = vadd.f32 %v577, %v422
    %v588 = vadd.f32 %v579, %v422
    %v589 = vtanh.pop %v581
    %v590 = vtanh.pop %v582
    %v591 = vtanh.pop %v583
    %v592 = vtanh.pop %v584
    %v593 = vtanh.pop %v585
    %v594 = vtanh.pop %v586
    %v595 = vtanh.pop %v587
    %v596 = vtanh.pop %v588
    %v598 = vperm.slane %v427, 0
    %v600 = vmul.f32 %v589, %v598
    %v601 = vmul.f32 %v590, %v598
    %v602 = vmul.f32 %v591, %v598
    %v603 = vmul.f32 %v592, %v598
    %v604 = vmul.f32 %v593, %v598
    %v605 = vmul.f32 %v594, %v598
    %v606 = vmul.f32 %v595, %v598
    %v607 = vmul.f32 %v596, %v598
    %v608 = vsel %vm249, %v600, 0.0
    %609 = vadd.xlane.f32.xlu0 %v608
    %v610 = vpop.xlane.xlu0 %609
    %v611 = vsel %vm249, %v601, 0.0
    %612 = vadd.xlane.f32.xlu0 %v611
    %v613 = vpop.xlane.xlu0 %612
    %v614 = vsel %vm249, %v602, 0.0
    %615 = vadd.xlane.f32.xlu0 %v614
    %v616 = vpop.xlane.xlu0 %615
    %v617 = vsel %vm249, %v603, 0.0
    %618 = vadd.xlane.f32.xlu0 %v617
    %v619 = vpop.xlane.xlu0 %618
    %v620 = vsel %vm249, %v604, 0.0
    %621 = vadd.xlane.f32.xlu0 %v620
    %v622 = vpop.xlane.xlu0 %621
    %v623 = vsel %vm249, %v605, 0.0
    %624 = vadd.xlane.f32.xlu0 %v623
    %v625 = vpop.xlane.xlu0 %624
    %v626 = vsel %vm249, %v606, 0.0
    %627 = vadd.xlane.f32.xlu0 %v626
    %v628 = vpop.xlane.xlu0 %627
    %v629 = vsel %vm249, %v607, 0.0
    %630 = vadd.xlane.f32.xlu0 %v629
    %v631 = vpop.xlane.xlu0 %630
    %v632 = vmax.f32 %v610, %v622
    %v633 = vmax.f32 %v613, %v625
    %v634 = vmax.f32 %v616, %v628
    %v635 = vmax.f32 %v619, %v631
    %v636 = vmax.f32 %v632, %v633
    %v637 = vmax.f32 %v634, %v635
    %v638 = vmax.f32 %v636, %v637
    %v639 = vsub.f32 %v610, %v638
    %v640 = vsub.f32 %v613, %v638
    %v641 = vsub.f32 %v616, %v638
    %v642 = vsub.f32 %v619, %v638
    %v643 = vsub.f32 %v622, %v638
    %v644 = vsub.f32 %v625, %v638
    %v645 = vsub.f32 %v628, %v638
    %v646 = vsub.f32 %v631, %v638
    %v647 = vmul.f32 %v639, 1.442695
    %v648 = vpow.pop %v647
    %v649 = vmul.f32 %v640, 1.442695
    %v650 = vpow.pop %v649
    %v651 = vmul.f32 %v641, 1.442695
    %v652 = vpow.pop %v651
    %v653 = vmul.f32 %v642, 1.442695
    %v654 = vpow.pop %v653
    %v655 = vmul.f32 %v643, 1.442695
    %v656 = vpow.pop %v655
    %v657 = vmul.f32 %v644, 1.442695
    %v658 = vpow.pop %v657
    %v659 = vmul.f32 %v645, 1.442695
    %v660 = vpow.pop %v659
    %v661 = vmul.f32 %v646, 1.442695
    %v662 = vpow.pop %v661
    %v663 = vadd.f32 %v648, %v650
    %v664 = vadd.f32 %v663, %v652
    %v665 = vadd.f32 %v664, %v654
    %v666 = vadd.f32 %v665, %v656
    %v667 = vadd.f32 %v666, %v658
    %v668 = vadd.f32 %v667, %v660
    %v669 = vadd.f32 %v668, %v662
    %v670 = vrcp.pop %v669
    %v671 = vmul.f32 %v648, %v670
    %v672 = vmul.f32 %v650, %v670
    %v673 = vmul.f32 %v652, %v670
    %v674 = vmul.f32 %v654, %v670
    %v675 = vmul.f32 %v656, %v670
    %v676 = vmul.f32 %v658, %v670
    %v677 = vmul.f32 %v660, %v670
    %v678 = vmul.f32 %v662, %v670
    %v679 = vmul.f32 %v671, %v492
    %v680 = vmul.f32 %v672, %v493
    %v681 = vmul.f32 %v673, %v494
    %v682 = vmul.f32 %v674, %v495
    %v683 = vmul.f32 %v675, %v496
    %v684 = vmul.f32 %v676, %v497
    %v685 = vmul.f32 %v677, %v498
    %v686 = vmul.f32 %v678, %v499
    %v687 = vsel %vm249, %v679, 0.0
    %v688 = vsel %vm249, %v680, 0.0
    %v689 = vadd.f32 %v687, %v688
    %v690 = vsel %vm249, %v681, 0.0
    %v691 = vadd.f32 %v689, %v690
    %v692 = vsel %vm249, %v682, 0.0
    %v693 = vadd.f32 %v691, %v692
    %v694 = vsel %vm249, %v683, 0.0
    %v695 = vadd.f32 %v693, %v694
    %v696 = vsel %vm249, %v684, 0.0
    %v697 = vadd.f32 %v695, %v696
    %v698 = vsel %vm249, %v685, 0.0
    %v699 = vadd.f32 %v697, %v698
    %v700 = vsel %vm249, %v686, 0.0
    %v701 = vadd.f32 %v699, %v700
    %702 = vst.msk [vmem:[#allocation12] sm:$0xff] %vm249, %v701
    // Predicated region
    $region62: #{tpu_custom_call.1} parent=1 // pred_check
      _
    $region63: #{tpu_custom_call.1} parent=1 // pred_check_branch
      %704 = sbr.rel (0) target = $region65
    $region64: #{tpu_custom_call.1} parent=1 // pred_region
      %706 = vsyncadd [#allocation4], 0
      %s708 = sshll.u32 [#allocation11], 4
      %s709 = int_to_ptr.vmem [resolvable:$true] %s708
      %s710 = sshll.u32 %s10, 4
      %s711 = int_to_ptr.hbm [resolvable:$true] %s710
      %713 = dma.vmem_to_hbm [thread:$0]  %s709, 128, %s711, [#allocation4]
    $region65: #{tpu_custom_call.1} parent=1 // pred_fallthru
      _
    // Predicated region
    $region66: #{tpu_custom_call.1} parent=1 // pred_check
      _
    $region67: #{tpu_custom_call.1} parent=1 // pred_check_branch
      %715 = sbr.rel (0) target = $region69
    $region68: #{tpu_custom_call.1} parent=1 // pred_region
      %717 = vsyncadd [#allocation13], 0
      %s719 = sshll.u32 [#allocation12], 4
      %s720 = int_to_ptr.vmem [resolvable:$true] %s719
      %s721 = sshll.u32 %s11, 4
      %s722 = int_to_ptr.hbm [resolvable:$true] %s721
      %724 = dma.vmem_to_hbm [thread:$0]  %s720, 128, %s722, [#allocation13]
    $region69: #{tpu_custom_call.1} parent=1 // pred_fallthru
      _
    // Predicated region
    $region70: #{tpu_custom_call.1} parent=1 // pred_check
      _
    $region71: #{tpu_custom_call.1} parent=1 // pred_check_branch
      %726 = sbr.rel (0) target = $region73
    $region72: #{tpu_custom_call.1} parent=1 // pred_region
      %728 = dma.done [#allocation4], 128
    $region73: #{tpu_custom_call.1} parent=1 // pred_fallthru
      _
    // Predicated region
    $region74: #{tpu_custom_call.1} parent=1 // pred_check
      _
    $region75: #{tpu_custom_call.1} parent=1 // pred_check_branch
      %730 = sbr.rel (0) target = $region77
    $region76: #{tpu_custom_call.1} parent=1 // pred_region
      %732 = dma.done [#allocation13], 128
    $region77: #{tpu_custom_call.1} parent=1 // pred_fallthru
      _
    %733 = vsyncpa [#allocation3], 1
    %734 = vsyncpa [#allocation6], 1
    %735 = vsyncpa [#allocation9], 1
    %736 = vsyncpa [#allocation4], 1
    %737 = vsyncpa [#allocation13], 1

// kernel: tpu_custom_call.1
$region0: #{tpu_custom_call.1}
  #allocation0 [shape = 'u32[]', space=smem, size = 0x4, offset = 0x4, fixed_abs, tag = 'smem constant byte address 0x4 - core index']
  #allocation1 [shape = 'u32[72,128]{1,0:T(1,128)}', space=vmem, size = 0x9000, scoped, tag = 'internal scratch']
  %s0 = inlined_call_operand.hbm [shape: f32[8,8,32], index: 0, kind: input, shape index: {}]
  %s1 = inlined_call_operand.hbm [shape: f32[8,8,32], index: 1, kind: input, shape index: {}]
  %s2 = inlined_call_operand.vmem [shape: f32[8,1], index: 2, kind: input, shape index: {}]
  %s3 = inlined_call_operand.vmem [shape: f32[8,1], index: 3, kind: input, shape index: {}]
  %s4 = inlined_call_operand.hbm [shape: f32[8,32], index: 4, kind: input, shape index: {}]
  %s5 = inlined_call_operand.hbm [shape: f32[8,32], index: 5, kind: input, shape index: {}]
  %s6 = inlined_call_operand.vmem [shape: bf16[32,32], index: 6, kind: input, shape index: {}]
  %s7 = inlined_call_operand.hbm [shape: bf16[32,32], index: 7, kind: input, shape index: {}]
  %s8 = inlined_call_operand.vmem [shape: f32[1,32], index: 8, kind: input, shape index: {}]
  %s9 = inlined_call_operand.vmem [shape: f32[1,32], index: 9, kind: input, shape index: {}]
  %s10 = inlined_call_operand.hbm [shape: f32[8,32], index: 10, kind: output, shape index: {0}]
  %s11 = inlined_call_operand.hbm [shape: f32[8,32], index: 11, kind: output, shape index: {1}]
  %12 = xla_tuple %s10, %s11
  %s13 = sld [smem:[#allocation0]]
  $region78: #{tpu_custom_call.1} parent=0
    _
  %s15 = ssub.s32 1, %s13
  %s16 = scalar_select 0, %s15, %s13
  $region1: #{tpu_custom_call.1} parent=0
    #allocation2 [shape = 'u8[32768]{0}', space=vmem, size = 0x8000, scoped, tag = 'input window, operand 0, single buffered']
    #allocation3 [shape = 's32[1]{0}', space=sflag, size = 0x4, scoped, tag = 'scoped memory for tpu_custom_call.1']
    #allocation4 [shape = 's32[1]{0}', space=sflag, size = 0x4, scoped, tag = 'scoped memory for tpu_custom_call.1']
    #allocation5 [shape = 'u8[32768]{0}', space=vmem, size = 0x8000, scoped, tag = 'input window, operand 1, single buffered']
    #allocation6 [shape = 's32[1]{0}', space=sflag, size = 0x4, scoped, tag = 'scoped memory for tpu_custom_call.1']
    #allocation7 [shape = 'u8[4096]{0}', space=vmem, size = 0x1000, scoped, tag = 'input window, operand 4, single buffered']
    #allocation8 [shape = 'u8[4096]{0}', space=vmem, size = 0x1000, scoped, tag = 'input window, operand 5, single buffered']
    #allocation9 [shape = 's32[1]{0}', space=sflag, size = 0x4, scoped, tag = 'scoped memory for tpu_custom_call.1']
    #allocation10 [shape = 'u8[8192]{0}', space=vmem, size = 0x2000, scoped, tag = 'input window, operand 7, single buffered']
    #allocation11 [shape = 'u8[4096]{0}', space=vmem, size = 0x1000, scoped, tag = 'output window, operand 0, single buffered']
    #allocation12 [shape = 'u8[4096]{0}', space=vmem, size = 0x1000, scoped, tag = 'output window, operand 1, single buffered']
    #allocation13 [shape = 's32[1]{0}', space=sflag, size = 0x4, scoped, tag = 'scoped memory for tpu_custom_call.1']
    %17 = vsyncpa [#allocation3], 0
    %18 = vsyncpa [#allocation6], 0
    %19 = vsyncpa [#allocation9], 0
    %20 = vsyncpa [#allocation4], 0
    %21 = vsyncpa [#allocation13], 0
    // Predicated region
    $region2: #{tpu_custom_call.1} parent=1 // pred_check
      _
    $region3: #{tpu_custom_call.1} parent=1 // pred_check_branch
      %23 = sbr.rel (0) target = $region5
    $region4: #{tpu_custom_call.1} parent=1 // pred_region
      %25 = vsyncadd [#allocation3], 0
      %s26 = sshll.u32 %s0, 4
      %s27 = int_to_ptr.hbm [resolvable:$true] %s26
      %s28 = sshll.u32 [#allocation2], 4
      %s29 = int_to_ptr.vmem [resolvable:$true] %s28
      %34 = dma.hbm_to_vmem [thread:$0]  %s27, 1024, %s29, [#allocation3], 128, 128, 8
    $region5: #{tpu_custom_call.1} parent=1 // pred_fallthru
      _
    // Predicated region
    $region6: #{tpu_custom_call.1} parent=1 // pred_check
      _
    $region7: #{tpu_custom_call.1} parent=1 // pred_check_branch
      %36 = sbr.rel (0) target = $region9
    $region8: #{tpu_custom_call.1} parent=1 // pred_region
      %38 = vsyncadd [#allocation6], 0
      %s39 = sshll.u32 %s1, 4
      %s40 = int_to_ptr.hbm [resolvable:$true] %s39
      %s41 = sshll.u32 [#allocation5], 4
      %s42 = int_to_ptr.vmem [resolvable:$true] %s41
      %47 = dma.hbm_to_vmem [thread:$0]  %s40, 1024, %s42, [#allocation6], 128, 128, 8
    $region9: #{tpu_custom_call.1} parent=1 // pred_fallthru
      _
    // Predicated region
    $region10: #{tpu_custom_call.1} parent=1 // pred_check
      _
    $region11: #{tpu_custom_call.1} parent=1 // pred_check_branch
      %49 = sbr.rel (0) target = $region13
    $region12: #{tpu_custom_call.1} parent=1 // pred_region
      _
    $region13: #{tpu_custom_call.1} parent=1 // pred_fallthru
      _
    // Predicated region
    $region14: #{tpu_custom_call.1} parent=1 // pred_check
      _
    $region15: #{tpu_custom_call.1} parent=1 // pred_check_branch
      %51 = sbr.rel (0) target = $region17
    $region16: #{tpu_custom_call.1} parent=1 // pred_region
      _
    $region17: #{tpu_custom_call.1} parent=1 // pred_fallthru
      _
    // Predicated region
    $region18: #{tpu_custom_call.1} parent=1 // pred_check
      _
    $region19: #{tpu_custom_call.1} parent=1 // pred_check_branch
      %53 = sbr.rel (0) target = $region21
    $region20: #{tpu_custom_call.1} parent=1 // pred_region
      %55 = vsyncadd [#allocation6], 0
      %s57 = sshll.u32 %s4, 4
      %s58 = int_to_ptr.hbm [resolvable:$true] %s57
      %s59 = sshll.u32 [#allocation7], 4
      %s60 = int_to_ptr.vmem [resolvable:$true] %s59
      %62 = dma.hbm_to_vmem [thread:$0]  %s58, 128, %s60, [#allocation6]
    $region21: #{tpu_custom_call.1} parent=1 // pred_fallthru
      _
    // Predicated region
    $region22: #{tpu_custom_call.1} parent=1 // pred_check
      _
    $region23: #{tpu_custom_call.1} parent=1 // pred_check_branch
      %64 = sbr.rel (0) target = $region25
    $region24: #{tpu_custom_call.1} parent=1 // pred_region
      %66 = vsyncadd [#allocation9], 0
      %s68 = sshll.u32 %s5, 4
      %s69 = int_to_ptr.hbm [resolvable:$true] %s68
      %s70 = sshll.u32 [#allocation8], 4
      %s71 = int_to_ptr.vmem [resolvable:$true] %s70
      %73 = dma.hbm_to_vmem [thread:$0]  %s69, 128, %s71, [#allocation9]
    $region25: #{tpu_custom_call.1} parent=1 // pred_fallthru
      _
    // Predicated region
    $region26: #{tpu_custom_call.1} parent=1 // pred_check
      _
    $region27: #{tpu_custom_call.1} parent=1 // pred_check_branch
      %75 = sbr.rel (0) target = $region29
    $region28: #{tpu_custom_call.1} parent=1 // pred_region
      _
    $region29: #{tpu_custom_call.1} parent=1 // pred_fallthru
      _
    // Predicated region
    $region30: #{tpu_custom_call.1} parent=1 // pred_check
      _
    $region31: #{tpu_custom_call.1} parent=1 // pred_check_branch
      %77 = sbr.rel (0) target = $region33
    $region32: #{tpu_custom_call.1} parent=1 // pred_region
      %79 = vsyncadd [#allocation9], 0
      %s80 = sshll.u32 %s7, 4
      %s81 = int_to_ptr.hbm [resolvable:$true] %s80
      %s82 = sshll.u32 [#allocation10], 4
      %s83 = int_to_ptr.vmem [resolvable:$true] %s82
      %88 = dma.hbm_to_vmem [thread:$0]  %s81, 256, %s83, [#allocation9], 64, 64, 4
    $region33: #{tpu_custom_call.1} parent=1 // pred_fallthru
      _
    // Predicated region
    $region34: #{tpu_custom_call.1} parent=1 // pred_check
      _
    $region35: #{tpu_custom_call.1} parent=1 // pred_check_branch
      %90 = sbr.rel (0) target = $region37
    $region36: #{tpu_custom_call.1} parent=1 // pred_region
      _
    $region37: #{tpu_custom_call.1} parent=1 // pred_fallthru
      _
    // Predicated region
    $region38: #{tpu_custom_call.1} parent=1 // pred_check
      _
    $region39: #{tpu_custom_call.1} parent=1 // pred_check_branch
      %92 = sbr.rel (0) target = $region41
    $region40: #{tpu_custom_call.1} parent=1 // pred_region
      _
    $region41: #{tpu_custom_call.1} parent=1 // pred_fallthru
      _
    // Predicated region
    $region42: #{tpu_custom_call.1} parent=1 // pred_check
      _
    $region43: #{tpu_custom_call.1} parent=1 // pred_check_branch
      %94 = sbr.rel (0) target = $region45
    $region44: #{tpu_custom_call.1} parent=1 // pred_region
      %96 = dma.done [#allocation3], 1024
    $region45: #{tpu_custom_call.1} parent=1 // pred_fallthru
      _
    // Predicated region
    $region46: #{tpu_custom_call.1} parent=1 // pred_check
      _
    $region47: #{tpu_custom_call.1} parent=1 // pred_check_branch
      %98 = sbr.rel (0) target = $region49
    $region48: #{tpu_custom_call.1} parent=1 // pred_region
      %100 = dma.done [#allocation6], 1024
    $region49: #{tpu_custom_call.1} parent=1 // pred_fallthru
      _
    // Predicated region
    $region50: #{tpu_custom_call.1} parent=1 // pred_check
      _
    $region51: #{tpu_custom_call.1} parent=1 // pred_check_branch
      %102 = sbr.rel (0) target = $region53
    $region52: #{tpu_custom_call.1} parent=1 // pred_region
      %104 = dma.done [#allocation6], 128
    $region53: #{tpu_custom_call.1} parent=1 // pred_fallthru
      _
    // Predicated region
    $region54: #{tpu_custom_call.1} parent=1 // pred_check
      _
    $region55: #{tpu_custom_call.1} parent=1 // pred_check_branch
      %106 = sbr.rel (0) target = $region57
    $region56: #{tpu_custom_call.1} parent=1 // pred_region
      %108 = dma.done [#allocation9], 128
    $region57: #{tpu_custom_call.1} parent=1 // pred_fallthru
      _
    // Predicated region
    $region58: #{tpu_custom_call.1} parent=1 // pred_check
      _
    $region59: #{tpu_custom_call.1} parent=1 // pred_check_branch
      %110 = sbr.rel (0) target = $region61
    $region60: #{tpu_custom_call.1} parent=1 // pred_region
      %112 = dma.done [#allocation9], 256
    $region61: #{tpu_custom_call.1} parent=1 // pred_fallthru
      _
    %v114 = vld [vmem:[#allocation2] sm:$0xff]
    %v115 = vld [vmem:[#allocation2 + $0x8] sm:$0xff]
    %v116 = vld [vmem:[#allocation2 + $0x10] sm:$0xff]
    %v117 = vld [vmem:[#allocation2 + $0x18] sm:$0xff]
    %v118 = vld [vmem:[#allocation2 + $0x20] sm:$0xff]
    %v119 = vld [vmem:[#allocation2 + $0x28] sm:$0xff]
    %v120 = vld [vmem:[#allocation2 + $0x30] sm:$0xff]
    %v121 = vld [vmem:[#allocation2 + $0x38] sm:$0xff]
    %v122 = vld [vmem:[%s2] sm:$0xff]
    %v123 = vld [vmem:[#allocation7] sm:$0xff]
    %v124 = vld [vmem:[%s6] sm:$0xf]
    %v125 = vld [vmem:[%s6 + $0x4] sm:$0xf]
    %v126 = vld [vmem:[%s6 + $0x8] sm:$0xf]
    %v127 = vld [vmem:[%s6 + $0xc] sm:$0xf]
    %v128 = vld [vmem:[%s8] sm:$0x1]
    %v129 = vcvt.s32.f32 0
    %v130 = vcvt.s32.f32 1
    %v131 = vcvt.s32.f32 2
    %v132 = vcvt.s32.f32 3
    %v133 = vcvt.s32.f32 4
    %v134 = vcvt.s32.f32 5
    %v135 = vcvt.s32.f32 6
    %v136 = vcvt.s32.f32 7
    %vm137 = vcmp.lt.f32.partialorder %v129, %v122
    %vm138 = vcmp.lt.f32.partialorder %v130, %v122
    %vm139 = vcmp.lt.f32.partialorder %v131, %v122
    %vm140 = vcmp.lt.f32.partialorder %v132, %v122
    %vm141 = vcmp.lt.f32.partialorder %v133, %v122
    %vm142 = vcmp.lt.f32.partialorder %v134, %v122
    %vm143 = vcmp.lt.f32.partialorder %v135, %v122
    %vm144 = vcmp.lt.f32.partialorder %v136, %v122
    %v145 = vsel %vm137, 1, 0
    %v146 = vsel %vm138, 1, 0
    %v147 = vsel %vm139, 1, 0
    %v148 = vsel %vm140, 1, 0
    %v149 = vsel %vm141, 1, 0
    %v150 = vsel %vm142, 1, 0
    %v151 = vsel %vm143, 1, 0
    %v152 = vsel %vm144, 1, 0
    %v153 = vcvt.s32.f32 %v145
    %v154 = vcvt.s32.f32 %v146
    %v155 = vcvt.s32.f32 %v147
    %v156 = vcvt.s32.f32 %v148
    %v157 = vcvt.s32.f32 %v149
    %v158 = vcvt.s32.f32 %v150
    %v159 = vcvt.s32.f32 %v151
    %v160 = vcvt.s32.f32 %v152
    %162 = vset.pattern.permute.xlu0 0
    %163 = vperm.xlu0 %162, %v153
    %v164 = vpop.permute.xlu0 %163
    %167 = vset.pattern.permute.xlu0 0
    %168 = vperm.xlu0 %167, %v154
    %v169 = vpop.permute.xlu0 %168
    %172 = vset.pattern.permute.xlu0 0
    %173 = vperm.xlu0 %172, %v155
    %v174 = vpop.permute.xlu0 %173
    %177 = vset.pattern.permute.xlu0 0
    %178 = vperm.xlu0 %177, %v156
    %v179 = vpop.permute.xlu0 %178
    %182 = vset.pattern.permute.xlu0 0
    %183 = vperm.xlu0 %182, %v157
    %v184 = vpop.permute.xlu0 %183
    %187 = vset.pattern.permute.xlu0 0
    %188 = vperm.xlu0 %187, %v158
    %v189 = vpop.permute.xlu0 %188
    %192 = vset.pattern.permute.xlu0 0
    %193 = vperm.xlu0 %192, %v159
    %v194 = vpop.permute.xlu0 %193
    %197 = vset.pattern.permute.xlu0 0
    %198 = vperm.xlu0 %197, %v160
    %v199 = vpop.permute.xlu0 %198
    %v201 = vmul.f32 %v164, %v114
    %v202 = vmul.f32 %v169, %v115
    %v203 = vmul.f32 %v174, %v116
    %v204 = vmul.f32 %v179, %v117
    %v205 = vmul.f32 %v184, %v118
    %v206 = vmul.f32 %v189, %v119
    %v207 = vmul.f32 %v194, %v120
    %v208 = vmul.f32 %v199, %v121
    %v209 = vpack.c.bf16 %v201, %v201
    %v210 = vpack.c.bf16 %v202, %v202
    %v211 = vpack.c.bf16 %v203, %v203
    %v212 = vpack.c.bf16 %v204, %v204
    %v213 = vpack.c.bf16 %v205, %v205
    %v214 = vpack.c.bf16 %v206, %v206
    %v215 = vpack.c.bf16 %v207, %v207
    %v216 = vpack.c.bf16 %v208, %v208
    %v225 = vunpack.c.l.b16 %v209
    %v226 = vunpack.c.l.b16 %v210
    %v227 = vunpack.c.l.b16 %v211
    %v228 = vunpack.c.l.b16 %v212
    %v229 = vunpack.c.l.b16 %v213
    %v230 = vunpack.c.l.b16 %v214
    %v231 = vunpack.c.l.b16 %v215
    %v232 = vunpack.c.l.b16 %v216
    %v233 = vpack.c.b16 %v226, %v225
    %v234 = vpack.c.b16 %v228, %v227
    %v235 = vpack.c.b16 %v230, %v229
    %v236 = vpack.c.b16 %v232, %v231
    %v241 = vunpack.c.l.b16 %v124
    %v242 = vunpack.c.l.b16 %v125
    %v243 = vunpack.c.l.b16 %v126
    %v244 = vunpack.c.l.b16 %v127
    %v245 = vpack.c.b16 %v242, %v241
    %v246 = vpack.c.b16 %v244, %v243
    %vm249 = vcmask 261120
    %v251 = vsel %vm249, %v233, 0
    %v254 = vsel %vm249, %v234, 0
    %v257 = vsel %vm249, %v235, 0
    %v260 = vsel %vm249, %v236, 0
    %262 = vmatpush.bf16.msra.mxu0 0
    %263 = vmatpush.bf16.msra.mxu0 0
    %264 = vmatpush.bf16.msra.mxu0 0
    %265 = vmatpush.bf16.msra.mxu0 0
    %266 = vmatpush.bf16.msra.mxu0 0
    %267 = vmatpush.bf16.msra.mxu0 0
    %268 = vmatpush.bf16.msra.mxu0 %v246
    %269 = vmatpush.bf16.msra.mxu0 %v245
    %270 = vmatmul.bf16.gmra.mxu0 %v251
    %v271 = vpop.f32.mrf.mxu0
    %v272 = vadd.f32 0.0, %v271
    %v273 = vpop.f32.mrf.mxu0
    %v274 = vadd.f32 0.0, %v273
    %275 = vmatmul.bf16.gmra.mxu0 %v254
    %v276 = vpop.f32.mrf.mxu0
    %v277 = vadd.f32 0.0, %v276
    %v278 = vpop.f32.mrf.mxu0
    %v279 = vadd.f32 0.0, %v278
    %280 = vmatmul.bf16.gmra.mxu0 %v257
    %v281 = vpop.f32.mrf.mxu0
    %v282 = vadd.f32 0.0, %v281
    %v283 = vpop.f32.mrf.mxu0
    %v284 = vadd.f32 0.0, %v283
    %285 = vmatmul.bf16.gmra.mxu0 %v260
    %v286 = vpop.f32.mrf.mxu0
    %v287 = vadd.f32 0.0, %v286
    %v288 = vpop.f32.mrf.mxu0
    %v289 = vadd.f32 0.0, %v288
    %290 = vdwg.mxu0
    %v291 = vadd.f32 %v272, %v123
    %v292 = vadd.f32 %v274, %v123
    %v293 = vadd.f32 %v277, %v123
    %v294 = vadd.f32 %v279, %v123
    %v295 = vadd.f32 %v282, %v123
    %v296 = vadd.f32 %v284, %v123
    %v297 = vadd.f32 %v287, %v123
    %v298 = vadd.f32 %v289, %v123
    %v299 = vtanh.pop %v291
    %v300 = vtanh.pop %v292
    %v301 = vtanh.pop %v293
    %v302 = vtanh.pop %v294
    %v303 = vtanh.pop %v295
    %v304 = vtanh.pop %v296
    %v305 = vtanh.pop %v297
    %v306 = vtanh.pop %v298
    %v308 = vperm.slane %v128, 0
    %v310 = vmul.f32 %v299, %v308
    %v311 = vmul.f32 %v300, %v308
    %v312 = vmul.f32 %v301, %v308
    %v313 = vmul.f32 %v302, %v308
    %v314 = vmul.f32 %v303, %v308
    %v315 = vmul.f32 %v304, %v308
    %v316 = vmul.f32 %v305, %v308
    %v317 = vmul.f32 %v306, %v308
    %v318 = vsel %vm249, %v310, 0.0
    %319 = vadd.xlane.f32.xlu0 %v318
    %v320 = vpop.xlane.xlu0 %319
    %v321 = vsel %vm249, %v311, 0.0
    %322 = vadd.xlane.f32.xlu0 %v321
    %v323 = vpop.xlane.xlu0 %322
    %v324 = vsel %vm249, %v312, 0.0
    %325 = vadd.xlane.f32.xlu0 %v324
    %v326 = vpop.xlane.xlu0 %325
    %v327 = vsel %vm249, %v313, 0.0
    %328 = vadd.xlane.f32.xlu0 %v327
    %v329 = vpop.xlane.xlu0 %328
    %v330 = vsel %vm249, %v314, 0.0
    %331 = vadd.xlane.f32.xlu0 %v330
    %v332 = vpop.xlane.xlu0 %331
    %v333 = vsel %vm249, %v315, 0.0
    %334 = vadd.xlane.f32.xlu0 %v333
    %v335 = vpop.xlane.xlu0 %334
    %v336 = vsel %vm249, %v316, 0.0
    %337 = vadd.xlane.f32.xlu0 %v336
    %v338 = vpop.xlane.xlu0 %337
    %v339 = vsel %vm249, %v317, 0.0
    %340 = vadd.xlane.f32.xlu0 %v339
    %v341 = vpop.xlane.xlu0 %340
    %v342 = vmax.f32 %v320, %v332
    %v343 = vmax.f32 %v323, %v335
    %v344 = vmax.f32 %v326, %v338
    %v345 = vmax.f32 %v329, %v341
    %v346 = vmax.f32 %v342, %v343
    %v347 = vmax.f32 %v344, %v345
    %v348 = vmax.f32 %v346, %v347
    %v349 = vsub.f32 %v320, %v348
    %v350 = vsub.f32 %v323, %v348
    %v351 = vsub.f32 %v326, %v348
    %v352 = vsub.f32 %v329, %v348
    %v353 = vsub.f32 %v332, %v348
    %v354 = vsub.f32 %v335, %v348
    %v355 = vsub.f32 %v338, %v348
    %v356 = vsub.f32 %v341, %v348
    %v357 = vmul.f32 %v349, 1.442695
    %v358 = vpow.pop %v357
    %v359 = vmul.f32 %v350, 1.442695
    %v360 = vpow.pop %v359
    %v361 = vmul.f32 %v351, 1.442695
    %v362 = vpow.pop %v361
    %v363 = vmul.f32 %v352, 1.442695
    %v364 = vpow.pop %v363
    %v365 = vmul.f32 %v353, 1.442695
    %v366 = vpow.pop %v365
    %v367 = vmul.f32 %v354, 1.442695
    %v368 = vpow.pop %v367
    %v369 = vmul.f32 %v355, 1.442695
    %v370 = vpow.pop %v369
    %v371 = vmul.f32 %v356, 1.442695
    %v372 = vpow.pop %v371
    %v373 = vadd.f32 %v358, %v360
    %v374 = vadd.f32 %v373, %v362
    %v375 = vadd.f32 %v374, %v364
    %v376 = vadd.f32 %v375, %v366
    %v377 = vadd.f32 %v376, %v368
    %v378 = vadd.f32 %v377, %v370
    %v379 = vadd.f32 %v378, %v372
    %v380 = vrcp.pop %v379
    %v381 = vmul.f32 %v358, %v380
    %v382 = vmul.f32 %v360, %v380
    %v383 = vmul.f32 %v362, %v380
    %v384 = vmul.f32 %v364, %v380
    %v385 = vmul.f32 %v366, %v380
    %v386 = vmul.f32 %v368, %v380
    %v387 = vmul.f32 %v370, %v380
    %v388 = vmul.f32 %v372, %v380
    %v389 = vmul.f32 %v381, %v201
    %v390 = vmul.f32 %v382, %v202
    %v391 = vmul.f32 %v383, %v203
    %v392 = vmul.f32 %v384, %v204
    %v393 = vmul.f32 %v385, %v205
    %v394 = vmul.f32 %v386, %v206
    %v395 = vmul.f32 %v387, %v207
    %v396 = vmul.f32 %v388, %v208
    %v397 = vsel %vm249, %v389, 0.0
    %v398 = vsel %vm249, %v390, 0.0
    %v399 = vadd.f32 %v397, %v398
    %v400 = vsel %vm249, %v391, 0.0
    %v401 = vadd.f32 %v399, %v400
    %v402 = vsel %vm249, %v392, 0.0
    %v403 = vadd.f32 %v401, %v402
    %v404 = vsel %vm249, %v393, 0.0
    %v405 = vadd.f32 %v403, %v404
    %v406 = vsel %vm249, %v394, 0.0
    %v407 = vadd.f32 %v405, %v406
    %v408 = vsel %vm249, %v395, 0.0
    %v409 = vadd.f32 %v407, %v408
    %v410 = vsel %vm249, %v396, 0.0
    %v411 = vadd.f32 %v409, %v410
    %412 = vst.msk [vmem:[#allocation11] sm:$0xff] %vm249, %v411
    %v413 = vld [vmem:[#allocation5] sm:$0xff]
    %v414 = vld [vmem:[#allocation5 + $0x8] sm:$0xff]
    %v415 = vld [vmem:[#allocation5 + $0x10] sm:$0xff]
    %v416 = vld [vmem:[#allocation5 + $0x18] sm:$0xff]
    %v417 = vld [vmem:[#allocation5 + $0x20] sm:$0xff]
    %v418 = vld [vmem:[#allocation5 + $0x28] sm:$0xff]
    %v419 = vld [vmem:[#allocation5 + $0x30] sm:$0xff]
    %v420 = vld [vmem:[#allocation5 + $0x38] sm:$0xff]
    %v421 = vld [vmem:[%s3] sm:$0xff]
    %v422 = vld [vmem:[#allocation8] sm:$0xff]
    %v423 = vld [vmem:[#allocation10] sm:$0xf]
    %v424 = vld [vmem:[#allocation10 + $0x4] sm:$0xf]
    %v425 = vld [vmem:[#allocation10 + $0x8] sm:$0xf]
    %v426 = vld [vmem:[#allocation10 + $0xc] sm:$0xf]
    %v427 = vld [vmem:[%s9] sm:$0x1]
    %vm428 = vcmp.lt.f32.partialorder %v129, %v421
    %vm429 = vcmp.lt.f32.partialorder %v130, %v421
    %vm430 = vcmp.lt.f32.partialorder %v131, %v421
    %vm431 = vcmp.lt.f32.partialorder %v132, %v421
    %vm432 = vcmp.lt.f32.partialorder %v133, %v421
    %vm433 = vcmp.lt.f32.partialorder %v134, %v421
    %vm434 = vcmp.lt.f32.partialorder %v135, %v421
    %vm435 = vcmp.lt.f32.partialorder %v136, %v421
    %v436 = vsel %vm428, 1, 0
    %v437 = vsel %vm429, 1, 0
    %v438 = vsel %vm430, 1, 0
    %v439 = vsel %vm431, 1, 0
    %v440 = vsel %vm432, 1, 0
    %v441 = vsel %vm433, 1, 0
    %v442 = vsel %vm434, 1, 0
    %v443 = vsel %vm435, 1, 0
    %v444 = vcvt.s32.f32 %v436
    %v445 = vcvt.s32.f32 %v437
    %v446 = vcvt.s32.f32 %v438
    %v447 = vcvt.s32.f32 %v439
    %v448 = vcvt.s32.f32 %v440
    %v449 = vcvt.s32.f32 %v441
    %v450 = vcvt.s32.f32 %v442
    %v451 = vcvt.s32.f32 %v443
    %453 = vset.pattern.permute.xlu0 0
    %454 = vperm.xlu0 %453, %v444
    %v455 = vpop.permute.xlu0 %454
    %458 = vset.pattern.permute.xlu0 0
    %459 = vperm.xlu0 %458, %v445
    %v460 = vpop.permute.xlu0 %459
    %463 = vset.pattern.permute.xlu0 0
    %464 = vperm.xlu0 %463, %v446
    %v465 = vpop.permute.xlu0 %464
    %468 = vset.pattern.permute.xlu0 0
    %469 = vperm.xlu0 %468, %v447
    %v470 = vpop.permute.xlu0 %469
    %473 = vset.pattern.permute.xlu0 0
    %474 = vperm.xlu0 %473, %v448
    %v475 = vpop.permute.xlu0 %474
    %478 = vset.pattern.permute.xlu0 0
    %479 = vperm.xlu0 %478, %v449
    %v480 = vpop.permute.xlu0 %479
    %483 = vset.pattern.permute.xlu0 0
    %484 = vperm.xlu0 %483, %v450
    %v485 = vpop.permute.xlu0 %484
    %488 = vset.pattern.permute.xlu0 0
    %489 = vperm.xlu0 %488, %v451
    %v490 = vpop.permute.xlu0 %489
    %v492 = vmul.f32 %v455, %v413
    %v493 = vmul.f32 %v460, %v414
    %v494 = vmul.f32 %v465, %v415
    %v495 = vmul.f32 %v470, %v416
    %v496 = vmul.f32 %v475, %v417
    %v497 = vmul.f32 %v480, %v418
    %v498 = vmul.f32 %v485, %v419
    %v499 = vmul.f32 %v490, %v420
    %v500 = vpack.c.bf16 %v492, %v492
    %v501 = vpack.c.bf16 %v493, %v493
    %v502 = vpack.c.bf16 %v494, %v494
    %v503 = vpack.c.bf16 %v495, %v495
    %v504 = vpack.c.bf16 %v496, %v496
    %v505 = vpack.c.bf16 %v497, %v497
    %v506 = vpack.c.bf16 %v498, %v498
    %v507 = vpack.c.bf16 %v499, %v499
    %v516 = vunpack.c.l.b16 %v500
    %v517 = vunpack.c.l.b16 %v501
    %v518 = vunpack.c.l.b16 %v502
    %v519 = vunpack.c.l.b16 %v503
    %v520 = vunpack.c.l.b16 %v504
    %v521 = vunpack.c.l.b16 %v505
    %v522 = vunpack.c.l.b16 %v506
    %v523 = vunpack.c.l.b16 %v507
    %v524 = vpack.c.b16 %v517, %v516
    %v525 = vpack.c.b16 %v519, %v518
    %v526 = vpack.c.b16 %v521, %v520
    %v527 = vpack.c.b16 %v523, %v522
    %v532 = vunpack.c.l.b16 %v423
    %v533 = vunpack.c.l.b16 %v424
    %v534 = vunpack.c.l.b16 %v425
    %v535 = vunpack.c.l.b16 %v426
    %v536 = vpack.c.b16 %v533, %v532
    %v537 = vpack.c.b16 %v535, %v534
    %v541 = vsel %vm249, %v524, 0
    %v544 = vsel %vm249, %v525, 0
    %v547 = vsel %vm249, %v526, 0
    %v550 = vsel %vm249, %v527, 0
    %552 = vmatpush.bf16.msra.mxu0 0
    %553 = vmatpush.bf16.msra.mxu0 0
    %554 = vmatpush.bf16.msra.mxu0 0
    %555 = vmatpush.bf16.msra.mxu0 0
    %556 = vmatpush.bf16.msra.mxu0 0
    %557 = vmatpush.bf16.msra.mxu0 0
    %558 = vmatpush.bf16.msra.mxu0 %v537
    %559 = vmatpush.bf16.msra.mxu0 %v536
    %560 = vmatmul.bf16.gmra.mxu0 %v541
    %v561 = vpop.f32.mrf.mxu0
    %v562 = vadd.f32 0.0, %v561
    %v563 = vpop.f32.mrf.mxu0
    %v564 = vadd.f32 0.0, %v563
    %565 = vmatmul.bf16.gmra.mxu0 %v544
    %v566 = vpop.f32.mrf.mxu0
    %v567 = vadd.f32 0.0, %v566
    %v568 = vpop.f32.mrf.mxu0
    %v569 = vadd.f32 0.0, %v568
    %570 = vmatmul.bf16.gmra.mxu0 %v547
    %v571 = vpop.f32.mrf.mxu0
    %v572 = vadd.f32 0.0, %v571
    %v573 = vpop.f32.mrf.mxu0
    %v574 = vadd.f32 0.0, %v573
    %575 = vmatmul.bf16.gmra.mxu0 %v550
    %v576 = vpop.f32.mrf.mxu0
    %v577 = vadd.f32 0.0, %v576
    %v578 = vpop.f32.mrf.mxu0
    %v579 = vadd.f32 0.0, %v578
    %580 = vdwg.mxu0
    %v581 = vadd.f32 %v562, %v422
    %v582 = vadd.f32 %v564, %v422
    %v583 = vadd.f32 %v567, %v422
    %v584 = vadd.f32 %v569, %v422
    %v585 = vadd.f32 %v572, %v422
    %v586 = vadd.f32 %v574, %v422
    %v587 = vadd.f32 %v577, %v422
    %v588 = vadd.f32 %v579, %v422
    %v589 = vtanh.pop %v581
    %v590 = vtanh.pop %v582
    %v591 = vtanh.pop %v583
    %v592 = vtanh.pop %v584
    %v593 = vtanh.pop %v585
    %v594 = vtanh.pop %v586
    %v595 = vtanh.pop %v587
    %v596 = vtanh.pop %v588
    %v598 = vperm.slane %v427, 0
    %v600 = vmul.f32 %v589, %v598
    %v601 = vmul.f32 %v590, %v598
    %v602 = vmul.f32 %v591, %v598
    %v603 = vmul.f32 %v592, %v598
    %v604 = vmul.f32 %v593, %v598
    %v605 = vmul.f32 %v594, %v598
    %v606 = vmul.f32 %v595, %v598
    %v607 = vmul.f32 %v596, %v598
    %v608 = vsel %vm249, %v600, 0.0
    %609 = vadd.xlane.f32.xlu0 %v608
    %v610 = vpop.xlane.xlu0 %609
    %v611 = vsel %vm249, %v601, 0.0
    %612 = vadd.xlane.f32.xlu0 %v611
    %v613 = vpop.xlane.xlu0 %612
    %v614 = vsel %vm249, %v602, 0.0
    %615 = vadd.xlane.f32.xlu0 %v614
    %v616 = vpop.xlane.xlu0 %615
    %v617 = vsel %vm249, %v603, 0.0
    %618 = vadd.xlane.f32.xlu0 %v617
    %v619 = vpop.xlane.xlu0 %618
    %v620 = vsel %vm249, %v604, 0.0
    %621 = vadd.xlane.f32.xlu0 %v620
    %v622 = vpop.xlane.xlu0 %621
    %v623 = vsel %vm249, %v605, 0.0
    %624 = vadd.xlane.f32.xlu0 %v623
    %v625 = vpop.xlane.xlu0 %624
    %v626 = vsel %vm249, %v606, 0.0
    %627 = vadd.xlane.f32.xlu0 %v626
    %v628 = vpop.xlane.xlu0 %627
    %v629 = vsel %vm249, %v607, 0.0
    %630 = vadd.xlane.f32.xlu0 %v629
    %v631 = vpop.xlane.xlu0 %630
    %v632 = vmax.f32 %v610, %v622
    %v633 = vmax.f32 %v613, %v625
    %v634 = vmax.f32 %v616, %v628
    %v635 = vmax.f32 %v619, %v631
    %v636 = vmax.f32 %v632, %v633
    %v637 = vmax.f32 %v634, %v635
    %v638 = vmax.f32 %v636, %v637
    %v639 = vsub.f32 %v610, %v638
    %v640 = vsub.f32 %v613, %v638
    %v641 = vsub.f32 %v616, %v638
    %v642 = vsub.f32 %v619, %v638
    %v643 = vsub.f32 %v622, %v638
    %v644 = vsub.f32 %v625, %v638
    %v645 = vsub.f32 %v628, %v638
    %v646 = vsub.f32 %v631, %v638
    %v647 = vmul.f32 %v639, 1.442695
    %v648 = vpow.pop %v647
    %v649 = vmul.f32 %v640, 1.442695
    %v650 = vpow.pop %v649
    %v651 = vmul.f32 %v641, 1.442695
    %v652 = vpow.pop %v651
    %v653 = vmul.f32 %v642, 1.442695
    %v654 = vpow.pop %v653
    %v655 = vmul.f32 %v643, 1.442695
    %v656 = vpow.pop %v655
    %v657 = vmul.f32 %v644, 1.442695
    %v658 = vpow.pop %v657
    %v659 = vmul.f32 %v645, 1.442695
    %v660 = vpow.pop %v659
    %v661 = vmul.f32 %v646, 1.442695
    %v662 = vpow.pop %v661
    %v663 = vadd.f32 %v648, %v650
    %v664 = vadd.f32 %v663, %v652
    %v665 = vadd.f32 %v664, %v654
    %v666 = vadd.f32 %v665, %v656
    %v667 = vadd.f32 %v666, %v658
    %v668 = vadd.f32 %v667, %v660
    %v669 = vadd.f32 %v668, %v662
    %v670 = vrcp.pop %v669
    %v671 = vmul.f32 %v648, %v670
    %v672 = vmul.f32 %v650, %v670
    %v673 = vmul.f32 %v652, %v670
    %v674 = vmul.f32 %v654, %v670
    %v675 = vmul.f32 %v656, %v670
    %v676 = vmul.f32 %v658, %v670
    %v677 = vmul.f32 %v660, %v670
    %v678 = vmul.f32 %v662, %v670
    %v679 = vmul.f32 %v671, %v492
    %v680 = vmul.f32 %v672, %v493
    %v681 = vmul.f32 %v673, %v494
    %v682 = vmul.f32 %v674, %v495
    %v683 = vmul.f32 %v675, %v496
    %v684 = vmul.f32 %v676, %v497
    %v685 = vmul.f32 %v677, %v498
    %v686 = vmul.f32 %v678, %v499
    %v687 = vsel %vm249, %v679, 0.0
    %v688 = vsel %vm249, %v680, 0.0
    %v689 = vadd.f32 %v687, %v688
    %v690 = vsel %vm249, %v681, 0.0
    %v691 = vadd.f32 %v689, %v690
    %v692 = vsel %vm249, %v682, 0.0
    %v693 = vadd.f32 %v691, %v692
    %v694 = vsel %vm249, %v683, 0.0
    %v695 = vadd.f32 %v693, %v694
    %v696 = vsel %vm249, %v684, 0.0
    %v697 = vadd.f32 %v695, %v696
    %v698 = vsel %vm249, %v685, 0.0
    %v699 = vadd.f32 %v697, %v698
    %v700 = vsel %vm249, %v686, 0.0
    %v701 = vadd.f32 %v699, %v700
    %702 = vst.msk [vmem:[#allocation12] sm:$0xff] %vm249, %v701
    // Predicated region
    $region62: #{tpu_custom_call.1} parent=1 // pred_check
      _
    $region63: #{tpu_custom_call.1} parent=1 // pred_check_branch
      %704 = sbr.rel (0) target = $region65
    $region64: #{tpu_custom_call.1} parent=1 // pred_region
      %706 = vsyncadd [#allocation4], 0
      %s708 = sshll.u32 [#allocation11], 4
      %s709 = int_to_ptr.vmem [resolvable:$true] %s708
      %s710 = sshll.u32 %s10, 4
      %s711 = int_to_ptr.hbm [resolvable:$true] %s710
      %713 = dma.vmem_to_hbm [thread:$0]  %s709, 128, %s711, [#allocation4]
    $region65: #{tpu_custom_call.1} parent=1 // pred_fallthru
      _
    // Predicated region
    $region66: #{tpu_custom_call.1} parent=1 // pred_check
      _
    $region67: #{tpu_custom_call.1} parent=1 // pred_check_branch
      %715 = sbr.rel (0) target = $region69
    $region68: #{tpu_custom_call.1} parent=1 // pred_region
      %717 = vsyncadd [#allocation13], 0
      %s719 = sshll.u32 [#allocation12], 4
      %s720 = int_to_ptr.vmem [resolvable:$true] %s719
      %s721 = sshll.u32 %s11, 4
      %s722 = int_to_ptr.hbm [resolvable:$true] %s721
      %724 = dma.vmem_to_hbm [thread:$0]  %s720, 128, %s722, [#allocation13]
    $region69: #{tpu_custom_call.1} parent=1 // pred_fallthru
      _
    // Predicated region
    $region70: #{tpu_custom_call.1} parent=1 // pred_check
      _
    $region71: #{tpu_custom_call.1} parent=1 // pred_check_branch
      %726 = sbr.rel (0) target = $region73
    $region72: #{tpu_custom_call.1} parent=1 // pred_region
      %728 = dma.done [#allocation4], 128
    $region73: #{tpu_custom_call.1} parent=1 // pred_fallthru
      _
    // Predicated region
    $region74: #{tpu_custom_call.1} parent=1 // pred_check
      _
    $region75: #{tpu_custom_call.1} parent=1 // pred_check_branch
      %730 = sbr.rel (0) target = $region77
    $region76: #{tpu_custom_call.1} parent=1 // pred_region
      %732 = dma.done [#allocation13], 128
    $region77: #{tpu_custom_call.1} parent=1 // pred_fallthru
      _
    %733 = vsyncpa [#allocation3], 1
    %734 = vsyncpa [#allocation6], 1
    %735 = vsyncpa [#allocation9], 1
    %736 = vsyncpa [#allocation4], 1
    %737 = vsyncpa [#allocation13], 1

</llo_original>
